<compile_context>
chip_gen: v7x
topology: tpu7x:2x2x1
jax: 0.10.0
libtpu: 0.0.40
codegen_flags: <defaults>
</compile_context>

<pallas_src>
import jax
import jax.numpy as jnp
from jax.experimental import pallas as pl
from jax.experimental.pallas import tpu as pltpu


def _round_up(x, m):
    return (x + m - 1) // m * m


def _conv_ref(x, w, b):
    """XLA reference / fallback: torch.nn.Conv2d(C, OC, 3, stride=2, padding=1) semantics."""
    out = jax.lax.conv_general_dilated(
        x, w, window_strides=(2, 2), padding=((1, 1), (1, 1)),
        dimension_numbers=("NCHW", "OIHW", "NCHW"))
    return out + b[None, :, None, None]


def _vmem_capacity_bytes():
    try:
        return int(pltpu.get_tpu_info().vmem_capacity_bytes)
    except Exception:
        return 64 * 1024 * 1024          # assume the smallest generation (v7x) if unknown


def _make_kernel(M_out, OWp, tn):
    """Fused stride-2 3x3 conv: 9 tap matmuls accumulated in an f32 VMEM scratch."""

    def kernel(spf_ref, w_ref, b_ref, o_ref, acc_ref):
        # spf_ref: (1, 4, M_in_p, C) bf16  -- parity planes, rows = flattened (oy, ox')
        # w_ref:   (9, C, tn)        bf16  -- per-tap weight columns for this OC tile
        # b_ref:   (1, tn)           f32
        # o_ref:   (1, M_out, tn)    out dtype
        # acc_ref: (M_out, tn)       f32 scratch
        for t in range(9):
            ky, kx = t // 3, t % 3
            p = (ky % 2) * 2 + (kx % 2)            # which parity plane
            off = (ky // 2) * OWp + (kx // 2)      # row shift inside the plane
            x_tap = spf_ref[0, p, pl.ds(off, M_out), :]               # (M_out, C) bf16
            d = jnp.dot(x_tap, w_ref[t], preferred_element_type=jnp.float32)
            if t == 0:
                acc_ref[...] = d
            else:
                acc_ref[...] += d
        o_ref[0] = (acc_ref[...] + b_ref[...]).astype(o_ref.dtype)

    return kernel


def downsample_conv2d(x, w, b, *, force_pallas=False, out_dtype=None):
    """Downsample (use_conv=True, dims=2): Conv2d(C, OC, 3, stride=2, padding=1).

    x: [B, C, H, W] (NCHW), w: [OC, C, 3, 3] (OIHW), b: [OC] -> [B, OC, H//2, W//2].
    """
    B, C, H, W = x.shape
    OC = w.shape[0]
    assert w.shape == (OC, C, 3, 3) and b.shape == (OC,)
    out_dtype = out_dtype or x.dtype

    # Tiny configs: the padded GEMM would be mostly zeros -> strictly slower than XLA conv.
    if not force_pallas and OC * 9 * C < 128 * 128:
        return _conv_ref(x, w, b).astype(out_dtype)
    if H % 2 or W % 2:
        # TODO(synk): odd spatial dims need an asymmetric space-to-depth; fall back for now.
        return _conv_ref(x, w, b).astype(out_dtype)

    OH, OW = H // 2, W // 2
    OHp, OWp = OH + 1, OW + 1            # parity-plane dims ((H+2)/2, (W+2)/2)
    M_out = OH * OWp                     # flattened output rows (last column is discarded)
    M_in = OHp * OWp + 1                 # +1: tap (2,2) of the last row peeks one row past
    M_in_p = _round_up(M_in, 8)
    OCp0 = _round_up(OC, 128)            # lane-dense output stores
    out_sz = jnp.dtype(out_dtype).itemsize

    # ---- glue: ONE pass over the input (transpose + pad + space-to-depth), no im2col.
    x_pad = jnp.pad(jnp.transpose(x, (0, 2, 3, 1)).astype(jnp.bfloat16),
                    ((0, 0), (1, 1), (1, 1), (0, 0)))                  # [B, H+2, W+2, C]
    spf = (x_pad.reshape(B, OHp, 2, OWp, 2, C)                         # y=2i+ry, x=2j+rx
                .transpose(0, 2, 4, 1, 3, 5)                           # [B, ry, rx, i, j, C]
                .reshape(B, 4, OHp * OWp, C))
    spf = jnp.pad(spf, ((0, 0), (0, 0), (0, M_in_p - OHp * OWp), (0, 0)))

    # weights: OIHW -> [tap, C, OC]  with wcol[t, c, oc] = w[oc, c, ky, kx], t = ky*3 + kx
    wcol = jnp.transpose(w, (2, 3, 1, 0)).reshape(9, C, OC).astype(jnp.bfloat16)
    bias = b.astype(jnp.float32).reshape(1, OC)

    # ---- OC tile: keep the whole OC resident if the VMEM budget allows (input streamed
    #      exactly once); shrink in multiples of 256 only when forced, pad OC UP to the tile.
    cap = _vmem_capacity_bytes()
    budget = min(int(cap * 0.75), 96 * 1024 * 1024)

    def vmem_need(tn_):
        return (2 * 4 * M_in_p * C * 2        # input block, double-buffered, bf16
                + 2 * 9 * C * tn_ * 2         # weight block, double-buffered, bf16
                + M_out * tn_ * 4             # f32 accumulator scratch
                + M_out * tn_ * 4             # matmul result temporary
                + 2 * M_out * C * 2           # tap-slice temporaries
                + 2 * M_out * tn_ * out_sz    # output block, double-buffered
                + 4 * tn_ * 4)                # bias

    tn = OCp0
    while tn > 256 and vmem_need(tn) > budget:
        tn = _round_up(tn // 2, 256)
    if vmem_need(tn) > budget and tn > 128:
        tn = 128
    if vmem_need(tn) > budget:
        # TODO(synk): image too large for a single spatial block; needs oy tiling. Fall back.
        return _conv_ref(x, w, b).astype(out_dtype)

    OCp = _round_up(OCp0, tn)
    wcol = jnp.pad(wcol, ((0, 0), (0, 0), (0, OCp - OC)))
    bias = jnp.pad(bias, ((0, 0), (0, OCp - OC)))

    grid = (B, OCp // tn)

    cost = pl.CostEstimate(
        flops=2 * B * M_out * 9 * C * OCp,
        transcendentals=0,
        bytes_accessed=int(spf.size) * 2 + int(wcol.size) * 2 * B
                       + int(B * M_out * OCp) * out_sz,
    )

    out_flat = pl.pallas_call(
        _make_kernel(M_out, OWp, tn),
        out_shape=jax.ShapeDtypeStruct((B, M_out, OCp), out_dtype),
        grid_spec=pltpu.PrefetchScalarGridSpec(
            num_scalar_prefetch=0,
            grid=grid,
            in_specs=[
                # whole padded image per batch element; constant over j -> fetched once per b
                pl.BlockSpec((1, 4, M_in_p, C), lambda bi, j: (bi, 0, 0, 0)),
                # all 9 taps of one OC tile resident per step
                pl.BlockSpec((9, C, tn), lambda bi, j: (0, 0, j)),
                pl.BlockSpec((1, tn), lambda bi, j: (0, j)),
            ],
            out_specs=pl.BlockSpec((1, M_out, tn), lambda bi, j: (bi, 0, j)),
            scratch_shapes=[pltpu.VMEM((M_out, tn), jnp.float32)],
        ),
        compiler_params=pltpu.CompilerParams(
            dimension_semantics=("parallel", "parallel"),
            vmem_limit_bytes=int(min(int(cap * 0.9),
                                     max(2 * vmem_need(tn), 48 * 1024 * 1024))),
        ),
        cost_estimate=cost,
    )(spf, wcol, bias)

    # ---- glue: drop the padded output column / channels, back to NCHW at the boundary.
    out = out_flat.reshape(B, OH, OWp, OCp)[:, :, :OW, :OC]
    return jnp.transpose(out, (0, 3, 1, 2))


if __name__ == "__main__":
    key = jax.random.PRNGKey(0)
    k1, k2, k3, k4, k5, k6 = jax.random.split(key, 6)

    # Case 1: the module's toy config (channels=4).  force_pallas=True so the Pallas kernel
    # itself is exercised (the auto path would route this tiny shape to lax.conv).
    B, C, H, W = 2, 4, 16, 16
    OC = C
    x = jax.random.normal(k1, (B, C, H, W), dtype=jnp.float32)
    w = jax.random.normal(k2, (OC, C, 3, 3), dtype=jnp.float32) * 0.1
    b = jax.random.normal(k3, (OC,), dtype=jnp.float32) * 0.1

    out = jax.block_until_ready(downsample_conv2d(x, w, b, force_pallas=True))
    ref = _conv_ref(x, w, b)
    assert out.shape == (B, OC, H // 2, W // 2)
    # bf16 MXU operands (f32 accumulation) -> tolerance loosened vs the pure-f32 reference.
    assert jnp.allclose(out, ref, atol=3e-2, rtol=3e-2), float(jnp.max(jnp.abs(out - ref)))

    # Case 2: channel count that takes the Pallas path automatically (real-ish grid).
    B2, C2, H2, W2 = 2, 128, 16, 16
    OC2 = 128
    x2 = jax.random.normal(k4, (B2, C2, H2, W2), dtype=jnp.float32)
    w2 = jax.random.normal(k5, (OC2, C2, 3, 3), dtype=jnp.float32) * 0.05
    b2 = jax.random.normal(k6, (OC2,), dtype=jnp.float32) * 0.1

    out2 = jax.block_until_ready(downsample_conv2d(x2, w2, b2))
    ref2 = _conv_ref(x2, w2, b2)
    assert out2.shape == (B2, OC2, H2 // 2, W2 // 2)
    assert jnp.allclose(out2, ref2, atol=5e-2, rtol=5e-2), float(jnp.max(jnp.abs(out2 - ref2)))

    print("KERNEL_OK")
</pallas_src>

<mosaic_0001>
module attributes {stable_mosaic.version = 11 : i64} {
  func.func @kernel(%arg0: i32, %arg1: i32, %arg2: memref<1x4x88x4xbf16, #tpu.memory_space<vmem>>, %arg3: memref<9x4x128xbf16, #tpu.memory_space<vmem>>, %arg4: memref<1x128xf32, #tpu.memory_space<vmem>>, %arg5: memref<1x72x128xf32, #tpu.memory_space<vmem>>, %arg6: memref<72x128xf32, #tpu.memory_space<vmem>>) attributes {dimension_semantics = [#tpu.dimension_semantics<parallel>, #tpu.dimension_semantics<parallel>], iteration_bounds = array<i64: 2, 1>, scalar_prefetch = 0 : i64, scratch_operands = 1 : i64, tpu.core_type = #tpu.core_type<tc>, window_params = [{transform_indices = @transform_0, window_bounds = array<i64: 1, 4, 88, 4>}, {transform_indices = @transform_1, window_bounds = array<i64: 9, 4, 128>}, {transform_indices = @transform_2, window_bounds = array<i64: 1, 128>}, {transform_indices = @transform_3, window_bounds = array<i64: 1, 72, 128>}]} {
    %c0 = arith.constant 0 : index
    %c0_0 = arith.constant 0 : index
    %c0_1 = arith.constant 0 : index
    %c0_2 = arith.constant 0 : index
    %0 = vector.load %arg2[%c0, %c0_0, %c0_1, %c0_2] : memref<1x4x88x4xbf16, #tpu.memory_space<vmem>>, vector<1x1x72x4xbf16>
    %1 = vector.shape_cast %0 : vector<1x1x72x4xbf16> to vector<72x4xbf16>
    %c0_3 = arith.constant 0 : index
    %c0_4 = arith.constant 0 : index
    %c0_5 = arith.constant 0 : index
    %2 = vector.load %arg3[%c0_3, %c0_4, %c0_5] : memref<9x4x128xbf16, #tpu.memory_space<vmem>>, vector<1x4x128xbf16>
    %3 = vector.shape_cast %2 : vector<1x4x128xbf16> to vector<4x128xbf16>
    %cst = arith.constant dense<0.000000e+00> : vector<72x128xf32>
    %4 = tpu.matmul %1, %3, %cst {dimension_numbers = #tpu.dot_dimension_numbers<[1], [0], [0], [1], [0, 0, 1, 1], [], []>} : vector<72x4xbf16>, vector<4x128xbf16>, vector<72x128xf32> -> vector<72x128xf32>
    %c0_6 = arith.constant 0 : index
    %c0_7 = arith.constant 0 : index
    %5 = vector.load %arg6[%c0_6, %c0_7] : memref<72x128xf32, #tpu.memory_space<vmem>>, vector<72x128xf32>
    tpu.vector_store %arg6[%c0_6, %c0_7], %4 {strides = array<i32>} : memref<72x128xf32, #tpu.memory_space<vmem>>, vector<72x128xf32>,
    %c0_8 = arith.constant 0 : index
    %c1 = arith.constant 1 : index
    %c0_9 = arith.constant 0 : index
    %c0_10 = arith.constant 0 : index
    %6 = vector.load %arg2[%c0_8, %c1, %c0_9, %c0_10] : memref<1x4x88x4xbf16, #tpu.memory_space<vmem>>, vector<1x1x72x4xbf16>
    %7 = vector.shape_cast %6 : vector<1x1x72x4xbf16> to vector<72x4xbf16>
    %c1_11 = arith.constant 1 : index
    %c0_12 = arith.constant 0 : index
    %c0_13 = arith.constant 0 : index
    %8 = vector.load %arg3[%c1_11, %c0_12, %c0_13] : memref<9x4x128xbf16, #tpu.memory_space<vmem>>, vector<1x4x128xbf16>
    %9 = vector.shape_cast %8 : vector<1x4x128xbf16> to vector<4x128xbf16>
    %cst_14 = arith.constant dense<0.000000e+00> : vector<72x128xf32>
    %10 = tpu.matmul %7, %9, %cst_14 {dimension_numbers = #tpu.dot_dimension_numbers<[1], [0], [0], [1], [0, 0, 1, 1], [], []>} : vector<72x4xbf16>, vector<4x128xbf16>, vector<72x128xf32> -> vector<72x128xf32>
    %c0_15 = arith.constant 0 : index
    %c0_16 = arith.constant 0 : index
    %11 = vector.load %arg6[%c0_15, %c0_16] : memref<72x128xf32, #tpu.memory_space<vmem>>, vector<72x128xf32>
    %12 = arith.addf %11, %10 : vector<72x128xf32>
    %c0_17 = arith.constant 0 : index
    %c0_18 = arith.constant 0 : index
    %13 = vector.load %arg6[%c0_17, %c0_18] : memref<72x128xf32, #tpu.memory_space<vmem>>, vector<72x128xf32>
    tpu.vector_store %arg6[%c0_17, %c0_18], %12 {strides = array<i32>} : memref<72x128xf32, #tpu.memory_space<vmem>>, vector<72x128xf32>,
    %c0_19 = arith.constant 0 : index
    %c0_20 = arith.constant 0 : index
    %c1_21 = arith.constant 1 : index
    %c0_22 = arith.constant 0 : index
    %14 = vector.load %arg2[%c0_19, %c0_20, %c1_21, %c0_22] : memref<1x4x88x4xbf16, #tpu.memory_space<vmem>>, vector<1x1x72x4xbf16>
    %15 = vector.shape_cast %14 : vector<1x1x72x4xbf16> to vector<72x4xbf16>
    %c2 = arith.constant 2 : index
    %c0_23 = arith.constant 0 : index
    %c0_24 = arith.constant 0 : index
    %16 = vector.load %arg3[%c2, %c0_23, %c0_24] : memref<9x4x128xbf16, #tpu.memory_space<vmem>>, vector<1x4x128xbf16>
    %17 = vector.shape_cast %16 : vector<1x4x128xbf16> to vector<4x128xbf16>
    %cst_25 = arith.constant dense<0.000000e+00> : vector<72x128xf32>
    %18 = tpu.matmul %15, %17, %cst_25 {dimension_numbers = #tpu.dot_dimension_numbers<[1], [0], [0], [1], [0, 0, 1, 1], [], []>} : vector<72x4xbf16>, vector<4x128xbf16>, vector<72x128xf32> -> vector<72x128xf32>
    %c0_26 = arith.constant 0 : index
    %c0_27 = arith.constant 0 : index
    %19 = vector.load %arg6[%c0_26, %c0_27] : memref<72x128xf32, #tpu.memory_space<vmem>>, vector<72x128xf32>
    %20 = arith.addf %19, %18 : vector<72x128xf32>
    %c0_28 = arith.constant 0 : index
    %c0_29 = arith.constant 0 : index
    %21 = vector.load %arg6[%c0_28, %c0_29] : memref<72x128xf32, #tpu.memory_space<vmem>>, vector<72x128xf32>
    tpu.vector_store %arg6[%c0_28, %c0_29], %20 {strides = array<i32>} : memref<72x128xf32, #tpu.memory_space<vmem>>, vector<72x128xf32>,
    %c0_30 = arith.constant 0 : index
    %c2_31 = arith.constant 2 : index
    %c0_32 = arith.constant 0 : index
    %c0_33 = arith.constant 0 : index
    %22 = vector.load %arg2[%c0_30, %c2_31, %c0_32, %c0_33] : memref<1x4x88x4xbf16, #tpu.memory_space<vmem>>, vector<1x1x72x4xbf16>
    %23 = vector.shape_cast %22 : vector<1x1x72x4xbf16> to vector<72x4xbf16>
    %c3 = arith.constant 3 : index
    %c0_34 = arith.constant 0 : index
    %c0_35 = arith.constant 0 : index
    %24 = vector.load %arg3[%c3, %c0_34, %c0_35] : memref<9x4x128xbf16, #tpu.memory_space<vmem>>, vector<1x4x128xbf16>
    %25 = vector.shape_cast %24 : vector<1x4x128xbf16> to vector<4x128xbf16>
    %cst_36 = arith.constant dense<0.000000e+00> : vector<72x128xf32>
    %26 = tpu.matmul %23, %25, %cst_36 {dimension_numbers = #tpu.dot_dimension_numbers<[1], [0], [0], [1], [0, 0, 1, 1], [], []>} : vector<72x4xbf16>, vector<4x128xbf16>, vector<72x128xf32> -> vector<72x128xf32>
    %c0_37 = arith.constant 0 : index
    %c0_38 = arith.constant 0 : index
    %27 = vector.load %arg6[%c0_37, %c0_38] : memref<72x128xf32, #tpu.memory_space<vmem>>, vector<72x128xf32>
    %28 = arith.addf %27, %26 : vector<72x128xf32>
    %c0_39 = arith.constant 0 : index
    %c0_40 = arith.constant 0 : index
    %29 = vector.load %arg6[%c0_39, %c0_40] : memref<72x128xf32, #tpu.memory_space<vmem>>, vector<72x128xf32>
    tpu.vector_store %arg6[%c0_39, %c0_40], %28 {strides = array<i32>} : memref<72x128xf32, #tpu.memory_space<vmem>>, vector<72x128xf32>,
    %c0_41 = arith.constant 0 : index
    %c3_42 = arith.constant 3 : index
    %c0_43 = arith.constant 0 : index
    %c0_44 = arith.constant 0 : index
    %30 = vector.load %arg2[%c0_41, %c3_42, %c0_43, %c0_44] : memref<1x4x88x4xbf16, #tpu.memory_space<vmem>>, vector<1x1x72x4xbf16>
    %31 = vector.shape_cast %30 : vector<1x1x72x4xbf16> to vector<72x4xbf16>
    %c4 = arith.constant 4 : index
    %c0_45 = arith.constant 0 : index
    %c0_46 = arith.constant 0 : index
    %32 = vector.load %arg3[%c4, %c0_45, %c0_46] : memref<9x4x128xbf16, #tpu.memory_space<vmem>>, vector<1x4x128xbf16>
    %33 = vector.shape_cast %32 : vector<1x4x128xbf16> to vector<4x128xbf16>
    %cst_47 = arith.constant dense<0.000000e+00> : vector<72x128xf32>
    %34 = tpu.matmul %31, %33, %cst_47 {dimension_numbers = #tpu.dot_dimension_numbers<[1], [0], [0], [1], [0, 0, 1, 1], [], []>} : vector<72x4xbf16>, vector<4x128xbf16>, vector<72x128xf32> -> vector<72x128xf32>
    %c0_48 = arith.constant 0 : index
    %c0_49 = arith.constant 0 : index
    %35 = vector.load %arg6[%c0_48, %c0_49] : memref<72x128xf32, #tpu.memory_space<vmem>>, vector<72x128xf32>
    %36 = arith.addf %35, %34 : vector<72x128xf32>
    %c0_50 = arith.constant 0 : index
    %c0_51 = arith.constant 0 : index
    %37 = vector.load %arg6[%c0_50, %c0_51] : memref<72x128xf32, #tpu.memory_space<vmem>>, vector<72x128xf32>
    tpu.vector_store %arg6[%c0_50, %c0_51], %36 {strides = array<i32>} : memref<72x128xf32, #tpu.memory_space<vmem>>, vector<72x128xf32>,
    %c0_52 = arith.constant 0 : index
    %c2_53 = arith.constant 2 : index
    %c1_54 = arith.constant 1 : index
    %c0_55 = arith.constant 0 : index
    %38 = vector.load %arg2[%c0_52, %c2_53, %c1_54, %c0_55] : memref<1x4x88x4xbf16, #tpu.memory_space<vmem>>, vector<1x1x72x4xbf16>
    %39 = vector.shape_cast %38 : vector<1x1x72x4xbf16> to vector<72x4xbf16>
    %c5 = arith.constant 5 : index
    %c0_56 = arith.constant 0 : index
    %c0_57 = arith.constant 0 : index
    %40 = vector.load %arg3[%c5, %c0_56, %c0_57] : memref<9x4x128xbf16, #tpu.memory_space<vmem>>, vector<1x4x128xbf16>
    %41 = vector.shape_cast %40 : vector<1x4x128xbf16> to vector<4x128xbf16>
    %cst_58 = arith.constant dense<0.000000e+00> : vector<72x128xf32>
    %42 = tpu.matmul %39, %41, %cst_58 {dimension_numbers = #tpu.dot_dimension_numbers<[1], [0], [0], [1], [0, 0, 1, 1], [], []>} : vector<72x4xbf16>, vector<4x128xbf16>, vector<72x128xf32> -> vector<72x128xf32>
    %c0_59 = arith.constant 0 : index
    %c0_60 = arith.constant 0 : index
    %43 = vector.load %arg6[%c0_59, %c0_60] : memref<72x128xf32, #tpu.memory_space<vmem>>, vector<72x128xf32>
    %44 = arith.addf %43, %42 : vector<72x128xf32>
    %c0_61 = arith.constant 0 : index
    %c0_62 = arith.constant 0 : index
    %45 = vector.load %arg6[%c0_61, %c0_62] : memref<72x128xf32, #tpu.memory_space<vmem>>, vector<72x128xf32>
    tpu.vector_store %arg6[%c0_61, %c0_62], %44 {strides = array<i32>} : memref<72x128xf32, #tpu.memory_space<vmem>>, vector<72x128xf32>,
    %c0_63 = arith.constant 0 : index
    %c0_64 = arith.constant 0 : index
    %c9 = arith.constant 9 : index
    %c0_65 = arith.constant 0 : index
    %46 = vector.load %arg2[%c0_63, %c0_64, %c9, %c0_65] : memref<1x4x88x4xbf16, #tpu.memory_space<vmem>>, vector<1x1x72x4xbf16>
    %47 = vector.shape_cast %46 : vector<1x1x72x4xbf16> to vector<72x4xbf16>
    %c6 = arith.constant 6 : index
    %c0_66 = arith.constant 0 : index
    %c0_67 = arith.constant 0 : index
    %48 = vector.load %arg3[%c6, %c0_66, %c0_67] : memref<9x4x128xbf16, #tpu.memory_space<vmem>>, vector<1x4x128xbf16>
    %49 = vector.shape_cast %48 : vector<1x4x128xbf16> to vector<4x128xbf16>
    %cst_68 = arith.constant dense<0.000000e+00> : vector<72x128xf32>
    %50 = tpu.matmul %47, %49, %cst_68 {dimension_numbers = #tpu.dot_dimension_numbers<[1], [0], [0], [1], [0, 0, 1, 1], [], []>} : vector<72x4xbf16>, vector<4x128xbf16>, vector<72x128xf32> -> vector<72x128xf32>
    %c0_69 = arith.constant 0 : index
    %c0_70 = arith.constant 0 : index
    %51 = vector.load %arg6[%c0_69, %c0_70] : memref<72x128xf32, #tpu.memory_space<vmem>>, vector<72x128xf32>
    %52 = arith.addf %51, %50 : vector<72x128xf32>
    %c0_71 = arith.constant 0 : index
    %c0_72 = arith.constant 0 : index
    %53 = vector.load %arg6[%c0_71, %c0_72] : memref<72x128xf32, #tpu.memory_space<vmem>>, vector<72x128xf32>
    tpu.vector_store %arg6[%c0_71, %c0_72], %52 {strides = array<i32>} : memref<72x128xf32, #tpu.memory_space<vmem>>, vector<72x128xf32>,
    %c0_73 = arith.constant 0 : index
    %c1_74 = arith.constant 1 : index
    %c9_75 = arith.constant 9 : index
    %c0_76 = arith.constant 0 : index
    %54 = vector.load %arg2[%c0_73, %c1_74, %c9_75, %c0_76] : memref<1x4x88x4xbf16, #tpu.memory_space<vmem>>, vector<1x1x72x4xbf16>
    %55 = vector.shape_cast %54 : vector<1x1x72x4xbf16> to vector<72x4xbf16>
    %c7 = arith.constant 7 : index
    %c0_77 = arith.constant 0 : index
    %c0_78 = arith.constant 0 : index
    %56 = vector.load %arg3[%c7, %c0_77, %c0_78] : memref<9x4x128xbf16, #tpu.memory_space<vmem>>, vector<1x4x128xbf16>
    %57 = vector.shape_cast %56 : vector<1x4x128xbf16> to vector<4x128xbf16>
    %cst_79 = arith.constant dense<0.000000e+00> : vector<72x128xf32>
    %58 = tpu.matmul %55, %57, %cst_79 {dimension_numbers = #tpu.dot_dimension_numbers<[1], [0], [0], [1], [0, 0, 1, 1], [], []>} : vector<72x4xbf16>, vector<4x128xbf16>, vector<72x128xf32> -> vector<72x128xf32>
    %c0_80 = arith.constant 0 : index
    %c0_81 = arith.constant 0 : index
    %59 = vector.load %arg6[%c0_80, %c0_81] : memref<72x128xf32, #tpu.memory_space<vmem>>, vector<72x128xf32>
    %60 = arith.addf %59, %58 : vector<72x128xf32>
    %c0_82 = arith.constant 0 : index
    %c0_83 = arith.constant 0 : index
    %61 = vector.load %arg6[%c0_82, %c0_83] : memref<72x128xf32, #tpu.memory_space<vmem>>, vector<72x128xf32>
    tpu.vector_store %arg6[%c0_82, %c0_83], %60 {strides = array<i32>} : memref<72x128xf32, #tpu.memory_space<vmem>>, vector<72x128xf32>,
    %c0_84 = arith.constant 0 : index
    %c0_85 = arith.constant 0 : index
    %c10 = arith.constant 10 : index
    %c0_86 = arith.constant 0 : index
    %62 = vector.load %arg2[%c0_84, %c0_85, %c10, %c0_86] : memref<1x4x88x4xbf16, #tpu.memory_space<vmem>>, vector<1x1x72x4xbf16>
    %63 = vector.shape_cast %62 : vector<1x1x72x4xbf16> to vector<72x4xbf16>
    %c8 = arith.constant 8 : index
    %c0_87 = arith.constant 0 : index
    %c0_88 = arith.constant 0 : index
    %64 = vector.load %arg3[%c8, %c0_87, %c0_88] : memref<9x4x128xbf16, #tpu.memory_space<vmem>>, vector<1x4x128xbf16>
    %65 = vector.shape_cast %64 : vector<1x4x128xbf16> to vector<4x128xbf16>
    %cst_89 = arith.constant dense<0.000000e+00> : vector<72x128xf32>
    %66 = tpu.matmul %63, %65, %cst_89 {dimension_numbers = #tpu.dot_dimension_numbers<[1], [0], [0], [1], [0, 0, 1, 1], [], []>} : vector<72x4xbf16>, vector<4x128xbf16>, vector<72x128xf32> -> vector<72x128xf32>
    %c0_90 = arith.constant 0 : index
    %c0_91 = arith.constant 0 : index
    %67 = vector.load %arg6[%c0_90, %c0_91] : memref<72x128xf32, #tpu.memory_space<vmem>>, vector<72x128xf32>
    %68 = arith.addf %67, %66 : vector<72x128xf32>
    %c0_92 = arith.constant 0 : index
    %c0_93 = arith.constant 0 : index
    %69 = vector.load %arg6[%c0_92, %c0_93] : memref<72x128xf32, #tpu.memory_space<vmem>>, vector<72x128xf32>
    tpu.vector_store %arg6[%c0_92, %c0_93], %68 {strides = array<i32>} : memref<72x128xf32, #tpu.memory_space<vmem>>, vector<72x128xf32>,
    %c0_94 = arith.constant 0 : index
    %c0_95 = arith.constant 0 : index
    %70 = vector.load %arg6[%c0_94, %c0_95] : memref<72x128xf32, #tpu.memory_space<vmem>>, vector<72x128xf32>
    %c0_96 = arith.constant 0 : index
    %c0_97 = arith.constant 0 : index
    %71 = vector.load %arg4[%c0_96, %c0_97] : memref<1x128xf32, #tpu.memory_space<vmem>>, vector<1x128xf32>
    %72 = vector.broadcast %71 : vector<1x128xf32> to vector<72x128xf32>
    %73 = arith.addf %70, %72 : vector<72x128xf32>
    %c0_98 = arith.constant 0 : index
    %c0_99 = arith.constant 0 : index
    %c0_100 = arith.constant 0 : index
    %74 = vector.load %arg5[%c0_98, %c0_99, %c0_100] : memref<1x72x128xf32, #tpu.memory_space<vmem>>, vector<1x72x128xf32>
    %75 = vector.shape_cast %74 : vector<1x72x128xf32> to vector<72x128xf32>
    %76 = vector.shape_cast %73 : vector<72x128xf32> to vector<1x72x128xf32>
    tpu.vector_store %arg5[%c0_98, %c0_99, %c0_100], %76 {strides = array<i32>} : memref<1x72x128xf32, #tpu.memory_space<vmem>>, vector<1x72x128xf32>,
    return
  }
  func.func @transform_0(%arg0: i32, %arg1: i32) -> (i32, i32, i32, i32) {
    %c0_i32 = arith.constant 0 : i32
    %c0_i32_0 = arith.constant 0 : i32
    %c0_i32_1 = arith.constant 0 : i32
    %c0_i32_2 = arith.constant 0 : i32
    return %arg0, %c0_i32, %c0_i32_0, %c0_i32_1 : i32, i32, i32, i32
  }
  func.func @transform_1(%arg0: i32, %arg1: i32) -> (i32, i32, i32) {
    %c0_i32 = arith.constant 0 : i32
    %c0_i32_0 = arith.constant 0 : i32
    %c0_i32_1 = arith.constant 0 : i32
    return %c0_i32, %c0_i32_0, %arg1 : i32, i32, i32
  }
  func.func @transform_2(%arg0: i32, %arg1: i32) -> (i32, i32) {
    %c0_i32 = arith.constant 0 : i32
    %c0_i32_0 = arith.constant 0 : i32
    return %c0_i32, %arg1 : i32, i32
  }
  func.func @transform_3(%arg0: i32, %arg1: i32) -> (i32, i32, i32) {
    %c0_i32 = arith.constant 0 : i32
    %c0_i32_0 = arith.constant 0 : i32
    return %arg0, %c0_i32, %arg1 : i32, i32, i32
  }
}

</mosaic_0001>

<llo_original>
// kernel: tpu_custom_call.1
$region0: #{tpu_custom_call.1}
  #allocation0 [shape = 'u32[]', space=smem, size = 0x4, offset = 0x4, fixed_abs, tag = 'smem constant byte address 0x4 - core index']
  #allocation1 [shape = 'u32[144,128]{1,0:T(1,128)}', space=vmem, size = 0x12000, scoped, tag = 'internal scratch']
  #allocation2 [shape = 'f32[72,128]{1,0:T(8,128)}', space=vmem, size = 0x9000, scoped, tag = 'scratch operand']
  %s0 = inlined_call_operand.vmem [shape: bf16[2,4,88,4], index: 0, kind: input, shape index: {}]
  %s1 = inlined_call_operand.vmem [shape: bf16[9,4,128], index: 1, kind: input, shape index: {}]
  %s2 = inlined_call_operand.vmem [shape: f32[1,128], index: 2, kind: input, shape index: {}]
  %s3 = inlined_call_operand.hbm [shape: f32[2,72,128], index: 3, kind: output, shape index: {}]
  %s4 = sld [smem:[#allocation0]]
  $region45: #{tpu_custom_call.1} parent=0
    _
  %s6 = ssub.s32 1, %s4
  %s7 = scalar_select 0, %s6, %s4
  $region1: #{tpu_custom_call.1} parent=0
    #allocation3 [shape = 'u8[73728]{0}', space=vmem, size = 0x12000, scoped, tag = 'output window, operand 0']
    #allocation4 [shape = 's32[2]{0}', space=sflag, size = 0x8, scoped, tag = 'scoped memory for tpu_custom_call.1']
    %8 = vsyncpa [#allocation4], 0
    %s9 = scalar_lea.sflag [#allocation4], 1
    %10 = vsyncpa %s9, 0
    loop: start=0, step=1, limit=4
    $region2: #{tpu_custom_call.1} parent=1 // loop_pre_header
      _
    $region3: #{tpu_custom_call.1} parent=1 // loop_header
      %s12 = sphi 0, %s16
      %p13 = scmp.ge.s32.totalorder %s12, 4
      %s19 = sphi 0, %s31
      %s20 = sphi 0, %s27
      %s21 = sphi 0, %s19
      %s22 = sphi 0, %s20
      %s23 = sphi 0, %s21
      %s24 = sphi 0, %s22
      %s34 = sphi 0, %s36
      %s37 = sphi 0, %s34
      %s38 = sphi 0, %s37
      %s54 = sphi 0, %s38
      %s60 = sphi 0, %s62
      %s63 = sphi 0, %s60
      %s64 = sphi 0, %s63
      %s80 = sphi 0, %s64
      %s86 = sphi 0, %s88
      %s89 = sphi 0, %s86
      %s90 = sphi 0, %s89
      %s106 = sphi 0, %s90
      %s114 = sphi 0, %s116
      %s117 = sphi 0, %s114
      %s118 = sphi 0, %s117
      %s134 = sphi 0, %s118
    $region4: #{tpu_custom_call.1} parent=1 // loop_header_branch
      %15 = sbr.rel (%p13) target = $region8
    $region5: #{tpu_custom_call.1} parent=1 // loop_body
      %s17 = ssub.s32 %s12, 1
      %s18 = ssub.s32 %s12, 2
      %s25 = sadd.s32 1, %s20
      %p26 = scmp.ge.s32.totalorder %s25, 1
      %s27 = scalar_select %p26, 0, %s25
      %s28 = sadd.s32 1, %s19
      %s29 = scalar_select %p26, %s28, %s19
      %p30 = scmp.ge.s32.totalorder %s29, 2
      %s31 = scalar_select %p30, 0, %s29
      %s32 = ssub.s32 %s19, %s31
      %p33 = scmp.eq.s32.totalorder %s32, 0
      %s35 = sadd.s32 %s34, 1
      %s36 = scalar_select %p33, %s34, %s35
      %p39 = pneg %p33
      %p40 = scmp.eq.s32.totalorder %s12, 1
      %p41 = por %p39, %p40
      %p42 = scmp.ne.s32.totalorder %s34, %s37
      %p43 = scmp.eq.s32.totalorder %s12, 0
      %p44 = por %p42, %p43
      %p45 = scmp.ne.s32.totalorder %s34, %s37
      %p46 = scmp.eq.s32.totalorder %s17, 1
      %p47 = por %p45, %p46
      %p48 = scmp.ne.s32.totalorder %s37, %s38
      %p49 = scmp.eq.s32.totalorder %s17, 0
      %p50 = por %p48, %p49
      %p51 = scmp.ne.s32.totalorder %s37, %s38
      %p52 = scmp.eq.s32.totalorder %s18, 1
      %p53 = por %p51, %p52
      %p55 = scmp.ne.s32.totalorder %s38, %s54
      %p56 = scmp.eq.s32.totalorder %s18, 0
      %p57 = por %p55, %p56
      %s58 = ssub.s32 %s20, %s27
      %p59 = scmp.eq.s32.totalorder %s58, 0
      %s61 = sadd.s32 %s60, 1
      %s62 = scalar_select %p59, %s60, %s61
      %p65 = pneg %p59
      %p66 = scmp.eq.s32.totalorder %s12, 1
      %p67 = por %p65, %p66
      %p68 = scmp.ne.s32.totalorder %s60, %s63
      %p69 = scmp.eq.s32.totalorder %s12, 0
      %p70 = por %p68, %p69
      %p71 = scmp.ne.s32.totalorder %s60, %s63
      %p72 = scmp.eq.s32.totalorder %s17, 1
      %p73 = por %p71, %p72
      %p74 = scmp.ne.s32.totalorder %s63, %s64
      %p75 = scmp.eq.s32.totalorder %s17, 0
      %p76 = por %p74, %p75
      %p77 = scmp.ne.s32.totalorder %s63, %s64
      %p78 = scmp.eq.s32.totalorder %s18, 1
      %p79 = por %p77, %p78
      %p81 = scmp.ne.s32.totalorder %s64, %s80
      %p82 = scmp.eq.s32.totalorder %s18, 0
      %p83 = por %p81, %p82
      %s84 = ssub.s32 %s20, %s27
      %p85 = scmp.eq.s32.totalorder %s84, 0
      %s87 = sadd.s32 %s86, 1
      %s88 = scalar_select %p85, %s86, %s87
      %p91 = pneg %p85
      %p92 = scmp.eq.s32.totalorder %s12, 1
      %p93 = por %p91, %p92
      %p94 = scmp.ne.s32.totalorder %s86, %s89
      %p95 = scmp.eq.s32.totalorder %s12, 0
      %p96 = por %p94, %p95
      %p97 = scmp.ne.s32.totalorder %s86, %s89
      %p98 = scmp.eq.s32.totalorder %s17, 1
      %p99 = por %p97, %p98
      %p100 = scmp.ne.s32.totalorder %s89, %s90
      %p101 = scmp.eq.s32.totalorder %s17, 0
      %p102 = por %p100, %p101
      %p103 = scmp.ne.s32.totalorder %s89, %s90
      %p104 = scmp.eq.s32.totalorder %s18, 1
      %p105 = por %p103, %p104
      %p107 = scmp.ne.s32.totalorder %s90, %s106
      %p108 = scmp.eq.s32.totalorder %s18, 0
      %p109 = por %p107, %p108
      %s110 = ssub.s32 %s19, %s31
      %s111 = ssub.s32 %s20, %s27
      %s112 = sor.u32 %s110, %s111
      %p113 = scmp.eq.s32.totalorder %s112, 0
      %s115 = sadd.s32 %s114, 1
      %s116 = scalar_select %p113, %s114, %s115
      %p119 = pneg %p113
      %p120 = scmp.eq.s32.totalorder %s12, 1
      %p121 = por %p119, %p120
      %p122 = scmp.ne.s32.totalorder %s114, %s117
      %p123 = scmp.eq.s32.totalorder %s12, 0
      %p124 = por %p122, %p123
      %p125 = scmp.ne.s32.totalorder %s114, %s117
      %p126 = scmp.eq.s32.totalorder %s17, 1
      %p127 = por %p125, %p126
      %p128 = scmp.ne.s32.totalorder %s117, %s118
      %p129 = scmp.eq.s32.totalorder %s17, 0
      %p130 = por %p128, %p129
      %p131 = scmp.ne.s32.totalorder %s117, %s118
      %p132 = scmp.eq.s32.totalorder %s18, 1
      %p133 = por %p131, %p132
      %p135 = scmp.ne.s32.totalorder %s118, %s134
      %p136 = scmp.eq.s32.totalorder %s18, 0
      %p137 = por %p135, %p136
      %p138 = scmp.le.s32.totalorder 1, %s12
      %p139 = scmp.lt.s32.totalorder %s12, 3
      %p140 = pnand %p138, %p139
      %p141 = pneg %p140
      // Predicated region
      $region9: #{tpu_custom_call.1} parent=5 // pred_check
        _
      $region10: #{tpu_custom_call.1} parent=5 // pred_check_branch
        %143 = sbr.rel (%p140) target = $region12
      $region11: #{tpu_custom_call.1} parent=5 // pred_region
        %s144 = ssub.s32 %s12, 1
        // Predicated region
        $region13: #{tpu_custom_call.1} parent=11 // pred_check
          %p145 = pneg %p76
        $region14: #{tpu_custom_call.1} parent=11 // pred_check_branch
          %147 = sbr.rel (%p145) target = $region16
        $region15: #{tpu_custom_call.1} parent=11 // pred_region
          %p148 = scmp.lt.s32.totalorder %s22, 0
          %s149 = scalar_select %p148, %s22, 0
          %s150 = smul.addr %s149, 2
          %s151 = scalar_lea.vmem %s1, %s150
        $region16: #{tpu_custom_call.1} parent=11 // pred_fallthru
          _
        // Predicated region
        $region17: #{tpu_custom_call.1} parent=11 // pred_check
          %p152 = pneg %p102
        $region18: #{tpu_custom_call.1} parent=11 // pred_check_branch
          %154 = sbr.rel (%p152) target = $region20
        $region19: #{tpu_custom_call.1} parent=11 // pred_region
          %p155 = scmp.lt.s32.totalorder %s22, 0
          %s156 = scalar_select %p155, %s22, 0
          %s157 = scalar_lea.vmem %s2, %s156
        $region20: #{tpu_custom_call.1} parent=11 // pred_fallthru
          _
      $region12: #{tpu_custom_call.1} parent=5 // pred_fallthru
        _
      %p158 = scmp.lt.s32.totalorder %s12, 2
      // Predicated region
      $region21: #{tpu_custom_call.1} parent=5 // pred_check
        %p159 = pneg %p158
      $region22: #{tpu_custom_call.1} parent=5 // pred_check_branch
        %161 = sbr.rel (%p159) target = $region24
      $region23: #{tpu_custom_call.1} parent=5 // pred_region
        // Predicated region
        $region25: #{tpu_custom_call.1} parent=23 // pred_check
          %p162 = pneg %p44
        $region26: #{tpu_custom_call.1} parent=23 // pred_check_branch
          %164 = sbr.rel (%p162) target = $region28
        $region27: #{tpu_custom_call.1} parent=23 // pred_region
          %p165 = scmp.lt.s32.totalorder %s19, 1
          %s166 = scalar_select %p165, %s19, 1
          %s167 = smul.addr %s166, 44
          %s168 = smul.addr %s167, 4
          %s169 = scalar_lea.vmem %s0, %s168
        $region28: #{tpu_custom_call.1} parent=23 // pred_fallthru
          _
      $region24: #{tpu_custom_call.1} parent=5 // pred_fallthru
        _
      %p170 = scmp.le.s32.totalorder 1, %s12
      %p171 = scmp.lt.s32.totalorder %s12, 3
      %p172 = pnand %p170, %p171
      %p173 = pneg %p172
      // Predicated region
      $region29: #{tpu_custom_call.1} parent=5 // pred_check
        _
      $region30: #{tpu_custom_call.1} parent=5 // pred_check_branch
        %175 = sbr.rel (%p172) target = $region32
      $region31: #{tpu_custom_call.1} parent=5 // pred_region
        %s176 = ssub.s32 %s12, 1
        %p177 = scmp.lt.s32.totalorder %s21, 1
        %s178 = scalar_select %p177, %s21, 1
        %s179 = smul.addr %s178, 44
        %s180 = smul.addr %s179, 4
        %s181 = scalar_lea.vmem %s0, %s180
        %p182 = pneg %p50
        %p183 = pneg %p47
        %p184 = scmp.lt.s32.totalorder %s22, 0
        %s185 = scalar_select %p184, %s22, 0
        %s186 = smul.addr %s185, 2
        %s187 = scalar_lea.vmem %s1, %s186
        %p188 = pneg %p76
        %p189 = pneg %p73
        %p190 = scmp.lt.s32.totalorder %s22, 0
        %s191 = scalar_select %p190, %s22, 0
        %s192 = scalar_lea.vmem %s2, %s191
        %p193 = pneg %p102
        %p194 = pneg %p99
        %p195 = pneg %p130
        %p196 = pneg %p127
        %s197 = sand.u32 %s117, 1
        %s198 = scalar_lea.sflag [#allocation4], %s197
        %s199 = sand.u32 %s117, 1
        %s200 = smul.addr %s199, 72
        %s201 = scalar_lea.vmem [#allocation3], %s200
        %p202 = scmp.lt.s32.totalorder %s21, 1
        %s203 = scalar_select %p202, %s21, 1
        %s204 = smul.addr %s203, 44
        %s205 = smul.addr %s204, 4
        %s206 = scalar_lea.vmem %s0, %s205
        %p207 = scmp.lt.s32.totalorder %s22, 0
        %s208 = scalar_select %p207, %s22, 0
        %s209 = smul.addr %s208, 2
        %s210 = scalar_lea.vmem %s1, %s209
        %p211 = scmp.lt.s32.totalorder %s22, 0
        %s212 = scalar_select %p211, %s22, 0
        %s213 = scalar_lea.vmem %s2, %s212
        %v215 = vld [vmem:[%s206] sm:$0xf]
        %v216 = vld [vmem:[%s206 + $0x4] sm:$0xf]
        %v217 = vld [vmem:[%s206 + $0x8] sm:$0xf]
        %v218 = vld [vmem:[%s206 + $0xc] sm:$0xf]
        %v219 = vld [vmem:[%s206 + $0x10] sm:$0xf]
        %v220 = vld [vmem:[%s206 + $0x14] sm:$0xf]
        %v221 = vld [vmem:[%s206 + $0x18] sm:$0xf]
        %v222 = vld [vmem:[%s206 + $0x1c] sm:$0xf]
        %v223 = vld [vmem:[%s206 + $0x20] sm:$0xf]
        %v224 = vld [vmem:[%s210] sm:$0x3]
        %v234 = vunpack.c.l.b16 %v215
        %v235 = vunpack.c.l.b16 %v216
        %v236 = vunpack.c.l.b16 %v217
        %v237 = vunpack.c.l.b16 %v218
        %v238 = vunpack.c.l.b16 %v219
        %v239 = vunpack.c.l.b16 %v220
        %v240 = vunpack.c.l.b16 %v221
        %v241 = vunpack.c.l.b16 %v222
        %v242 = vunpack.c.l.b16 %v223
        %v243 = vpack.c.b16 %v235, %v234
        %v244 = vpack.c.b16 %v237, %v236
        %v245 = vpack.c.b16 %v239, %v238
        %v246 = vpack.c.b16 %v241, %v240
        %v247 = vpack.c.b16 %v242, %v242
        %vm248 = vcmask 31744
        %v250 = vsel %vm248, %v243, 0
        %v253 = vsel %vm248, %v244, 0
        %v256 = vsel %vm248, %v245, 0
        %v259 = vsel %vm248, %v246, 0
        %v262 = vsel %vm248, %v247, 0
        %vm264 = vcmask 1041408
        %v266 = vsel %vm264, %v224, 0
        %268 = vmatprep.subr.bf16.mxu0 0
        %269 = vmatpush1.bf16.msra.mxu0 %v266
        %270 = vmatprep.subr.bf16.mxu0 0
        %271 = vmatpush1.bf16.msra.mxu0 0
        %272 = vmatprep.subr.bf16.mxu0 0
        %273 = vmatpush1.bf16.msra.mxu0 0
        %274 = vmatprep.subr.bf16.mxu0 0
        %275 = vmatpush1.bf16.msra.mxu0 0
        %276 = vmatprep.subr.bf16.mxu0 0
        %277 = vmatpush1.bf16.msra.mxu0 0
        %278 = vmatprep.subr.bf16.mxu0 0
        %279 = vmatpush1.bf16.msra.mxu0 0
        %280 = vmatprep.subr.bf16.mxu0 0
        %281 = vmatpush1.bf16.msra.mxu0 0
        %282 = vmatprep.subr.bf16.mxu0 0
        %283 = vmatpush1.bf16.msra.mxu0 0
        %284 = vmatprep.subr.bf16.mxu0 0
        %285 = vmatpush1.bf16.msra.mxu0 0
        %286 = vmatprep.subr.bf16.mxu0 0
        %287 = vmatpush1.bf16.msra.mxu0 0
        %288 = vmatprep.subr.bf16.mxu0 0
        %289 = vmatpush1.bf16.msra.mxu0 0
        %290 = vmatprep.subr.bf16.mxu0 0
        %291 = vmatpush1.bf16.msra.mxu0 0
        %292 = vmatprep.subr.bf16.mxu0 0
        %293 = vmatpush1.bf16.msra.mxu0 0
        %294 = vmatprep.subr.bf16.mxu0 0
        %295 = vmatpush1.bf16.msra.mxu0 0
        %296 = vmatprep.subr.bf16.mxu0 0
        %297 = vmatpush1.bf16.msra.mxu0 0
        %298 = vmatprep.subr.bf16.mxu0 0
        %299 = vmatpush1.bf16.msra.mxu0 0
        %300 = vmatprep.mubr.bf16.mxu0 0
        %301 = vmatmul.mubr.bf16.gmra.mrb[0].mxu0 %v250
        %v302 = vpop.f32.mrb[0].mxu0
        %v303 = vadd.f32 0.0, %v302
        %v304 = vpop.f32.mrb[0].mxu0
        %v305 = vpop.f32.mrb[0].mxu0
        %v306 = vadd.f32 0.0, %v305
        %v307 = vpop.f32.mrb[0].mxu0
        %308 = vmatprep.mubr.bf16.mxu0 0
        %309 = vmatmul.mubr.bf16.gmra.mrb[0].mxu0 %v253
        %v310 = vpop.f32.mrb[0].mxu0
        %v311 = vadd.f32 0.0, %v310
        %v312 = vpop.f32.mrb[0].mxu0
        %v313 = vpop.f32.mrb[0].mxu0
        %v314 = vadd.f32 0.0, %v313
        %v315 = vpop.f32.mrb[0].mxu0
        %316 = vmatprep.mubr.bf16.mxu0 0
        %317 = vmatmul.mubr.bf16.gmra.mrb[0].mxu0 %v256
        %v318 = vpop.f32.mrb[0].mxu0
        %v319 = vadd.f32 0.0, %v318
        %v320 = vpop.f32.mrb[0].mxu0
        %v321 = vpop.f32.mrb[0].mxu0
        %v322 = vadd.f32 0.0, %v321
        %v323 = vpop.f32.mrb[0].mxu0
        %324 = vmatprep.mubr.bf16.mxu0 0
        %325 = vmatmul.mubr.bf16.gmra.mrb[0].mxu0 %v259
        %v326 = vpop.f32.mrb[0].mxu0
        %v327 = vadd.f32 0.0, %v326
        %v328 = vpop.f32.mrb[0].mxu0
        %v329 = vpop.f32.mrb[0].mxu0
        %v330 = vadd.f32 0.0, %v329
        %v331 = vpop.f32.mrb[0].mxu0
        %332 = vmatprep.mubr.bf16.mxu0 0
        %333 = vmatmul.mubr.bf16.gmra.mrb[0].mxu0 %v262
        %v334 = vpop.f32.mrb[0].mxu0
        %v335 = vadd.f32 0.0, %v334
        %v336 = vpop.f32.mrb[0].mxu0
        %v337 = vpop.f32.mrb[0].mxu0
        %v338 = vpop.f32.mrb[0].mxu0
        %339 = vdwg.mxu0
        %340 = vst [vmem:[#allocation2] sm:$0xff] %v303
        %341 = vst [vmem:[#allocation2 + $0x8] sm:$0xff] %v306
        %342 = vst [vmem:[#allocation2 + $0x10] sm:$0xff] %v311
        %343 = vst [vmem:[#allocation2 + $0x18] sm:$0xff] %v314
        %344 = vst [vmem:[#allocation2 + $0x20] sm:$0xff] %v319
        %345 = vst [vmem:[#allocation2 + $0x28] sm:$0xff] %v322
        %346 = vst [vmem:[#allocation2 + $0x30] sm:$0xff] %v327
        %347 = vst [vmem:[#allocation2 + $0x38] sm:$0xff] %v330
        %348 = vst [vmem:[#allocation2 + $0x40] sm:$0xff] %v335
        %s349 = scalar_lea.vmem %s206, 44
        %v350 = vld [vmem:[%s349] sm:$0xf]
        %v351 = vld [vmem:[%s349 + $0x4] sm:$0xf]
        %v352 = vld [vmem:[%s349 + $0x8] sm:$0xf]
        %v353 = vld [vmem:[%s349 + $0xc] sm:$0xf]
        %v354 = vld [vmem:[%s349 + $0x10] sm:$0xf]
        %v355 = vld [vmem:[%s349 + $0x14] sm:$0xf]
        %v356 = vld [vmem:[%s349 + $0x18] sm:$0xf]
        %v357 = vld [vmem:[%s349 + $0x1c] sm:$0xf]
        %v358 = vld [vmem:[%s349 + $0x20] sm:$0xf]
        %s359 = scalar_lea.vmem %s210, 2
        %v360 = vld [vmem:[%s359] sm:$0x3]
        %v370 = vunpack.c.l.b16 %v350
        %v371 = vunpack.c.l.b16 %v351
        %v372 = vunpack.c.l.b16 %v352
        %v373 = vunpack.c.l.b16 %v353
        %v374 = vunpack.c.l.b16 %v354
        %v375 = vunpack.c.l.b16 %v355
        %v376 = vunpack.c.l.b16 %v356
        %v377 = vunpack.c.l.b16 %v357
        %v378 = vunpack.c.l.b16 %v358
        %v379 = vpack.c.b16 %v371, %v370
        %v380 = vpack.c.b16 %v373, %v372
        %v381 = vpack.c.b16 %v375, %v374
        %v382 = vpack.c.b16 %v377, %v376
        %v383 = vpack.c.b16 %v378, %v378
        %v385 = vsel %vm248, %v379, 0
        %v388 = vsel %vm248, %v380, 0
        %v391 = vsel %vm248, %v381, 0
        %v394 = vsel %vm248, %v382, 0
        %v397 = vsel %vm248, %v383, 0
        %v400 = vsel %vm264, %v360, 0
        %402 = vmatprep.subr.bf16.mxu0 0
        %403 = vmatpush1.bf16.msra.mxu0 %v400
        %404 = vmatprep.subr.bf16.mxu0 0
        %405 = vmatpush1.bf16.msra.mxu0 0
        %406 = vmatprep.subr.bf16.mxu0 0
        %407 = vmatpush1.bf16.msra.mxu0 0
        %408 = vmatprep.subr.bf16.mxu0 0
        %409 = vmatpush1.bf16.msra.mxu0 0
        %410 = vmatprep.subr.bf16.mxu0 0
        %411 = vmatpush1.bf16.msra.mxu0 0
        %412 = vmatprep.subr.bf16.mxu0 0
        %413 = vmatpush1.bf16.msra.mxu0 0
        %414 = vmatprep.subr.bf16.mxu0 0
        %415 = vmatpush1.bf16.msra.mxu0 0
        %416 = vmatprep.subr.bf16.mxu0 0
        %417 = vmatpush1.bf16.msra.mxu0 0
        %418 = vmatprep.subr.bf16.mxu0 0
        %419 = vmatpush1.bf16.msra.mxu0 0
        %420 = vmatprep.subr.bf16.mxu0 0
        %421 = vmatpush1.bf16.msra.mxu0 0
        %422 = vmatprep.subr.bf16.mxu0 0
        %423 = vmatpush1.bf16.msra.mxu0 0
        %424 = vmatprep.subr.bf16.mxu0 0
        %425 = vmatpush1.bf16.msra.mxu0 0
        %426 = vmatprep.subr.bf16.mxu0 0
        %427 = vmatpush1.bf16.msra.mxu0 0
        %428 = vmatprep.subr.bf16.mxu0 0
        %429 = vmatpush1.bf16.msra.mxu0 0
        %430 = vmatprep.subr.bf16.mxu0 0
        %431 = vmatpush1.bf16.msra.mxu0 0
        %432 = vmatprep.subr.bf16.mxu0 0
        %433 = vmatpush1.bf16.msra.mxu0 0
        %434 = vmatprep.mubr.bf16.mxu0 0
        %435 = vmatmul.mubr.bf16.gmra.mrb[0].mxu0 %v385
        %v436 = vpop.f32.mrb[0].mxu0
        %v437 = vadd.f32 0.0, %v436
        %v438 = vpop.f32.mrb[0].mxu0
        %v439 = vpop.f32.mrb[0].mxu0
        %v440 = vadd.f32 0.0, %v439
        %v441 = vpop.f32.mrb[0].mxu0
        %442 = vmatprep.mubr.bf16.mxu0 0
        %443 = vmatmul.mubr.bf16.gmra.mrb[0].mxu0 %v388
        %v444 = vpop.f32.mrb[0].mxu0
        %v445 = vadd.f32 0.0, %v444
        %v446 = vpop.f32.mrb[0].mxu0
        %v447 = vpop.f32.mrb[0].mxu0
        %v448 = vadd.f32 0.0, %v447
        %v449 = vpop.f32.mrb[0].mxu0
        %450 = vmatprep.mubr.bf16.mxu0 0
        %451 = vmatmul.mubr.bf16.gmra.mrb[0].mxu0 %v391
        %v452 = vpop.f32.mrb[0].mxu0
        %v453 = vadd.f32 0.0, %v452
        %v454 = vpop.f32.mrb[0].mxu0
        %v455 = vpop.f32.mrb[0].mxu0
        %v456 = vadd.f32 0.0, %v455
        %v457 = vpop.f32.mrb[0].mxu0
        %458 = vmatprep.mubr.bf16.mxu0 0
        %459 = vmatmul.mubr.bf16.gmra.mrb[0].mxu0 %v394
        %v460 = vpop.f32.mrb[0].mxu0
        %v461 = vadd.f32 0.0, %v460
        %v462 = vpop.f32.mrb[0].mxu0
        %v463 = vpop.f32.mrb[0].mxu0
        %v464 = vadd.f32 0.0, %v463
        %v465 = vpop.f32.mrb[0].mxu0
        %466 = vmatprep.mubr.bf16.mxu0 0
        %467 = vmatmul.mubr.bf16.gmra.mrb[0].mxu0 %v397
        %v468 = vpop.f32.mrb[0].mxu0
        %v469 = vadd.f32 0.0, %v468
        %v470 = vpop.f32.mrb[0].mxu0
        %v471 = vpop.f32.mrb[0].mxu0
        %v472 = vpop.f32.mrb[0].mxu0
        %473 = vdwg.mxu0
        %v474 = vld [vmem:[#allocation2] sm:$0xff]
        %v475 = vld [vmem:[#allocation2 + $0x8] sm:$0xff]
        %v476 = vld [vmem:[#allocation2 + $0x10] sm:$0xff]
        %v477 = vld [vmem:[#allocation2 + $0x18] sm:$0xff]
        %v478 = vld [vmem:[#allocation2 + $0x20] sm:$0xff]
        %v479 = vld [vmem:[#allocation2 + $0x28] sm:$0xff]
        %v480 = vld [vmem:[#allocation2 + $0x30] sm:$0xff]
        %v481 = vld [vmem:[#allocation2 + $0x38] sm:$0xff]
        %v482 = vld [vmem:[#allocation2 + $0x40] sm:$0xff]
        %v483 = vadd.f32 %v474, %v437
        %v484 = vadd.f32 %v475, %v440
        %v485 = vadd.f32 %v476, %v445
        %v486 = vadd.f32 %v477, %v448
        %v487 = vadd.f32 %v478, %v453
        %v488 = vadd.f32 %v479, %v456
        %v489 = vadd.f32 %v480, %v461
        %v490 = vadd.f32 %v481, %v464
        %v491 = vadd.f32 %v482, %v469
        %492 = vst [vmem:[#allocation2] sm:$0xff] %v483
        %493 = vst [vmem:[#allocation2 + $0x8] sm:$0xff] %v484
        %494 = vst [vmem:[#allocation2 + $0x10] sm:$0xff] %v485
        %495 = vst [vmem:[#allocation2 + $0x18] sm:$0xff] %v486
        %496 = vst [vmem:[#allocation2 + $0x20] sm:$0xff] %v487
        %497 = vst [vmem:[#allocation2 + $0x28] sm:$0xff] %v488
        %498 = vst [vmem:[#allocation2 + $0x30] sm:$0xff] %v489
        %499 = vst [vmem:[#allocation2 + $0x38] sm:$0xff] %v490
        %500 = vst [vmem:[#allocation2 + $0x40] sm:$0xff] %v491
        %v501 = vld [vmem:[%s206] sm:$0xf]
        %v502 = vld [vmem:[%s206 + $0x4] sm:$0xf]
        %v503 = vld [vmem:[%s206 + $0x8] sm:$0xf]
        %v504 = vld [vmem:[%s206 + $0xc] sm:$0xf]
        %v505 = vld [vmem:[%s206 + $0x10] sm:$0xf]
        %v506 = vld [vmem:[%s206 + $0x14] sm:$0xf]
        %v507 = vld [vmem:[%s206 + $0x18] sm:$0xf]
        %v508 = vld [vmem:[%s206 + $0x1c] sm:$0xf]
        %v509 = vld [vmem:[%s206 + $0x20] sm:$0xf]
        %v510 = vld [vmem:[%s206 + $0x24] sm:$0x1]
        %s511 = scalar_lea.vmem %s210, 4
        %v512 = vld [vmem:[%s511] sm:$0x3]
        %v523 = vunpack.c.l.b16 %v501
        %v524 = vunpack.c.l.b16 %v502
        %v525 = vunpack.c.l.b16 %v503
        %v526 = vunpack.c.l.b16 %v504
        %v527 = vunpack.c.l.b16 %v505
        %v528 = vunpack.c.l.b16 %v506
        %v529 = vunpack.c.l.b16 %v507
        %v530 = vunpack.c.l.b16 %v508
        %v531 = vunpack.c.l.b16 %v509
        %v532 = vunpack.c.l.b16 %v510
        %v533 = vpack.c.b16 %v524, %v523
        %v534 = vpack.c.b16 %v526, %v525
        %v535 = vpack.c.b16 %v528, %v527
        %v536 = vpack.c.b16 %v530, %v529
        %v537 = vpack.c.b16 %v532, %v531
        %vm538 = vsmask.f32 7424
        %v540 = vshrl.u32 %v533, 16
        %v542 = vshll.u32 %v533, 16
        %v544 = vrot.slane %v542, 1
        %v545 = vor.u32 %v540, %v544
        %v547 = vshll.u32 %v534, 16
        %v549 = vrot.slane %v547, 1
        %v550 = vsel %vm538, %v545, %v549
        %v551 = vshrl.u32 %v534, 16
        %v553 = vor.u32 %v551, %v549
        %v555 = vshll.u32 %v535, 16
        %v557 = vrot.slane %v555, 1
        %v558 = vsel %vm538, %v553, %v557
        %v559 = vshrl.u32 %v535, 16
        %v561 = vor.u32 %v559, %v557
        %v563 = vshll.u32 %v536, 16
        %v565 = vrot.slane %v563, 1
        %v566 = vsel %vm538, %v561, %v565
        %v567 = vshrl.u32 %v536, 16
        %v569 = vor.u32 %v567, %v565
        %v571 = vshll.u32 %v537, 16
        %v573 = vrot.slane %v571, 1
        %v574 = vsel %vm538, %v569, %v573
        %v575 = vshrl.u32 %v537, 16
        %v577 = vor.u32 %v575, %v573
        %v579 = vsel %vm248, %v550, 0
        %v582 = vsel %vm248, %v558, 0
        %v585 = vsel %vm248, %v566, 0
        %v588 = vsel %vm248, %v574, 0
        %v591 = vsel %vm248, %v577, 0
        %v594 = vsel %vm264, %v512, 0
        %596 = vmatprep.subr.bf16.mxu0 0
        %597 = vmatpush1.bf16.msra.mxu0 %v594
        %598 = vmatprep.subr.bf16.mxu0 0
        %599 = vmatpush1.bf16.msra.mxu0 0
        %600 = vmatprep.subr.bf16.mxu0 0
        %601 = vmatpush1.bf16.msra.mxu0 0
        %602 = vmatprep.subr.bf16.mxu0 0
        %603 = vmatpush1.bf16.msra.mxu0 0
        %604 = vmatprep.subr.bf16.mxu0 0
        %605 = vmatpush1.bf16.msra.mxu0 0
        %606 = vmatprep.subr.bf16.mxu0 0
        %607 = vmatpush1.bf16.msra.mxu0 0
        %608 = vmatprep.subr.bf16.mxu0 0
        %609 = vmatpush1.bf16.msra.mxu0 0
        %610 = vmatprep.subr.bf16.mxu0 0
        %611 = vmatpush1.bf16.msra.mxu0 0
        %612 = vmatprep.subr.bf16.mxu0 0
        %613 = vmatpush1.bf16.msra.mxu0 0
        %614 = vmatprep.subr.bf16.mxu0 0
        %615 = vmatpush1.bf16.msra.mxu0 0
        %616 = vmatprep.subr.bf16.mxu0 0
        %617 = vmatpush1.bf16.msra.mxu0 0
        %618 = vmatprep.subr.bf16.mxu0 0
        %619 = vmatpush1.bf16.msra.mxu0 0
        %620 = vmatprep.subr.bf16.mxu0 0
        %621 = vmatpush1.bf16.msra.mxu0 0
        %622 = vmatprep.subr.bf16.mxu0 0
        %623 = vmatpush1.bf16.msra.mxu0 0
        %624 = vmatprep.subr.bf16.mxu0 0
        %625 = vmatpush1.bf16.msra.mxu0 0
        %626 = vmatprep.subr.bf16.mxu0 0
        %627 = vmatpush1.bf16.msra.mxu0 0
        %628 = vmatprep.mubr.bf16.mxu0 0
        %629 = vmatmul.mubr.bf16.gmra.mrb[0].mxu0 %v579
        %v630 = vpop.f32.mrb[0].mxu0
        %v631 = vadd.f32 0.0, %v630
        %v632 = vpop.f32.mrb[0].mxu0
        %v633 = vpop.f32.mrb[0].mxu0
        %v634 = vadd.f32 0.0, %v633
        %v635 = vpop.f32.mrb[0].mxu0
        %636 = vmatprep.mubr.bf16.mxu0 0
        %637 = vmatmul.mubr.bf16.gmra.mrb[0].mxu0 %v582
        %v638 = vpop.f32.mrb[0].mxu0
        %v639 = vadd.f32 0.0, %v638
        %v640 = vpop.f32.mrb[0].mxu0
        %v641 = vpop.f32.mrb[0].mxu0
        %v642 = vadd.f32 0.0, %v641
        %v643 = vpop.f32.mrb[0].mxu0
        %644 = vmatprep.mubr.bf16.mxu0 0
        %645 = vmatmul.mubr.bf16.gmra.mrb[0].mxu0 %v585
        %v646 = vpop.f32.mrb[0].mxu0
        %v647 = vadd.f32 0.0, %v646
        %v648 = vpop.f32.mrb[0].mxu0
        %v649 = vpop.f32.mrb[0].mxu0
        %v650 = vadd.f32 0.0, %v649
        %v651 = vpop.f32.mrb[0].mxu0
        %652 = vmatprep.mubr.bf16.mxu0 0
        %653 = vmatmul.mubr.bf16.gmra.mrb[0].mxu0 %v588
        %v654 = vpop.f32.mrb[0].mxu0
        %v655 = vadd.f32 0.0, %v654
        %v656 = vpop.f32.mrb[0].mxu0
        %v657 = vpop.f32.mrb[0].mxu0
        %v658 = vadd.f32 0.0, %v657
        %v659 = vpop.f32.mrb[0].mxu0
        %660 = vmatprep.mubr.bf16.mxu0 0
        %661 = vmatmul.mubr.bf16.gmra.mrb[0].mxu0 %v591
        %v662 = vpop.f32.mrb[0].mxu0
        %v663 = vadd.f32 0.0, %v662
        %v664 = vpop.f32.mrb[0].mxu0
        %v665 = vpop.f32.mrb[0].mxu0
        %v666 = vpop.f32.mrb[0].mxu0
        %667 = vdwg.mxu0
        %v668 = vld [vmem:[#allocation2] sm:$0xff]
        %v669 = vld [vmem:[#allocation2 + $0x8] sm:$0xff]
        %v670 = vld [vmem:[#allocation2 + $0x10] sm:$0xff]
        %v671 = vld [vmem:[#allocation2 + $0x18] sm:$0xff]
        %v672 = vld [vmem:[#allocation2 + $0x20] sm:$0xff]
        %v673 = vld [vmem:[#allocation2 + $0x28] sm:$0xff]
        %v674 = vld [vmem:[#allocation2 + $0x30] sm:$0xff]
        %v675 = vld [vmem:[#allocation2 + $0x38] sm:$0xff]
        %v676 = vld [vmem:[#allocation2 + $0x40] sm:$0xff]
        %v677 = vadd.f32 %v668, %v631
        %v678 = vadd.f32 %v669, %v634
        %v679 = vadd.f32 %v670, %v639
        %v680 = vadd.f32 %v671, %v642
        %v681 = vadd.f32 %v672, %v647
        %v682 = vadd.f32 %v673, %v650
        %v683 = vadd.f32 %v674, %v655
        %v684 = vadd.f32 %v675, %v658
        %v685 = vadd.f32 %v676, %v663
        %686 = vst [vmem:[#allocation2] sm:$0xff] %v677
        %687 = vst [vmem:[#allocation2 + $0x8] sm:$0xff] %v678
        %688 = vst [vmem:[#allocation2 + $0x10] sm:$0xff] %v679
        %689 = vst [vmem:[#allocation2 + $0x18] sm:$0xff] %v680
        %690 = vst [vmem:[#allocation2 + $0x20] sm:$0xff] %v681
        %691 = vst [vmem:[#allocation2 + $0x28] sm:$0xff] %v682
        %692 = vst [vmem:[#allocation2 + $0x30] sm:$0xff] %v683
        %693 = vst [vmem:[#allocation2 + $0x38] sm:$0xff] %v684
        %694 = vst [vmem:[#allocation2 + $0x40] sm:$0xff] %v685
        %s695 = scalar_lea.vmem %s206, 88
        %v696 = vld [vmem:[%s695] sm:$0xf]
        %v697 = vld [vmem:[%s695 + $0x4] sm:$0xf]
        %v698 = vld [vmem:[%s695 + $0x8] sm:$0xf]
        %v699 = vld [vmem:[%s695 + $0xc] sm:$0xf]
        %v700 = vld [vmem:[%s695 + $0x10] sm:$0xf]
        %v701 = vld [vmem:[%s695 + $0x14] sm:$0xf]
        %v702 = vld [vmem:[%s695 + $0x18] sm:$0xf]
        %v703 = vld [vmem:[%s695 + $0x1c] sm:$0xf]
        %v704 = vld [vmem:[%s695 + $0x20] sm:$0xf]
        %s705 = scalar_lea.vmem %s210, 6
        %v706 = vld [vmem:[%s705] sm:$0x3]
        %v716 = vunpack.c.l.b16 %v696
        %v717 = vunpack.c.l.b16 %v697
        %v718 = vunpack.c.l.b16 %v698
        %v719 = vunpack.c.l.b16 %v699
        %v720 = vunpack.c.l.b16 %v700
        %v721 = vunpack.c.l.b16 %v701
        %v722 = vunpack.c.l.b16 %v702
        %v723 = vunpack.c.l.b16 %v703
        %v724 = vunpack.c.l.b16 %v704
        %v725 = vpack.c.b16 %v717, %v716
        %v726 = vpack.c.b16 %v719, %v718
        %v727 = vpack.c.b16 %v721, %v720
        %v728 = vpack.c.b16 %v723, %v722
        %v729 = vpack.c.b16 %v724, %v724
        %v731 = vsel %vm248, %v725, 0
        %v734 = vsel %vm248, %v726, 0
        %v737 = vsel %vm248, %v727, 0
        %v740 = vsel %vm248, %v728, 0
        %v743 = vsel %vm248, %v729, 0
        %v746 = vsel %vm264, %v706, 0
        %748 = vmatprep.subr.bf16.mxu0 0
        %749 = vmatpush1.bf16.msra.mxu0 %v746
        %750 = vmatprep.subr.bf16.mxu0 0
        %751 = vmatpush1.bf16.msra.mxu0 0
        %752 = vmatprep.subr.bf16.mxu0 0
        %753 = vmatpush1.bf16.msra.mxu0 0
        %754 = vmatprep.subr.bf16.mxu0 0
        %755 = vmatpush1.bf16.msra.mxu0 0
        %756 = vmatprep.subr.bf16.mxu0 0
        %757 = vmatpush1.bf16.msra.mxu0 0
        %758 = vmatprep.subr.bf16.mxu0 0
        %759 = vmatpush1.bf16.msra.mxu0 0
        %760 = vmatprep.subr.bf16.mxu0 0
        %761 = vmatpush1.bf16.msra.mxu0 0
        %762 = vmatprep.subr.bf16.mxu0 0
        %763 = vmatpush1.bf16.msra.mxu0 0
        %764 = vmatprep.subr.bf16.mxu0 0
        %765 = vmatpush1.bf16.msra.mxu0 0
        %766 = vmatprep.subr.bf16.mxu0 0
        %767 = vmatpush1.bf16.msra.mxu0 0
        %768 = vmatprep.subr.bf16.mxu0 0
        %769 = vmatpush1.bf16.msra.mxu0 0
        %770 = vmatprep.subr.bf16.mxu0 0
        %771 = vmatpush1.bf16.msra.mxu0 0
        %772 = vmatprep.subr.bf16.mxu0 0
        %773 = vmatpush1.bf16.msra.mxu0 0
        %774 = vmatprep.subr.bf16.mxu0 0
        %775 = vmatpush1.bf16.msra.mxu0 0
        %776 = vmatprep.subr.bf16.mxu0 0
        %777 = vmatpush1.bf16.msra.mxu0 0
        %778 = vmatprep.subr.bf16.mxu0 0
        %779 = vmatpush1.bf16.msra.mxu0 0
        %780 = vmatprep.mubr.bf16.mxu0 0
        %781 = vmatmul.mubr.bf16.gmra.mrb[0].mxu0 %v731
        %v782 = vpop.f32.mrb[0].mxu0
        %v783 = vadd.f32 0.0, %v782
        %v784 = vpop.f32.mrb[0].mxu0
        %v785 = vpop.f32.mrb[0].mxu0
        %v786 = vadd.f32 0.0, %v785
        %v787 = vpop.f32.mrb[0].mxu0
        %788 = vmatprep.mubr.bf16.mxu0 0
        %789 = vmatmul.mubr.bf16.gmra.mrb[0].mxu0 %v734
        %v790 = vpop.f32.mrb[0].mxu0
        %v791 = vadd.f32 0.0, %v790
        %v792 = vpop.f32.mrb[0].mxu0
        %v793 = vpop.f32.mrb[0].mxu0
        %v794 = vadd.f32 0.0, %v793
        %v795 = vpop.f32.mrb[0].mxu0
        %796 = vmatprep.mubr.bf16.mxu0 0
        %797 = vmatmul.mubr.bf16.gmra.mrb[0].mxu0 %v737
        %v798 = vpop.f32.mrb[0].mxu0
        %v799 = vadd.f32 0.0, %v798
        %v800 = vpop.f32.mrb[0].mxu0
        %v801 = vpop.f32.mrb[0].mxu0
        %v802 = vadd.f32 0.0, %v801
        %v803 = vpop.f32.mrb[0].mxu0
        %804 = vmatprep.mubr.bf16.mxu0 0
        %805 = vmatmul.mubr.bf16.gmra.mrb[0].mxu0 %v740
        %v806 = vpop.f32.mrb[0].mxu0
        %v807 = vadd.f32 0.0, %v806
        %v808 = vpop.f32.mrb[0].mxu0
        %v809 = vpop.f32.mrb[0].mxu0
        %v810 = vadd.f32 0.0, %v809
        %v811 = vpop.f32.mrb[0].mxu0
        %812 = vmatprep.mubr.bf16.mxu0 0
        %813 = vmatmul.mubr.bf16.gmra.mrb[0].mxu0 %v743
        %v814 = vpop.f32.mrb[0].mxu0
        %v815 = vadd.f32 0.0, %v814
        %v816 = vpop.f32.mrb[0].mxu0
        %v817 = vpop.f32.mrb[0].mxu0
        %v818 = vpop.f32.mrb[0].mxu0
        %819 = vdwg.mxu0
        %v820 = vld [vmem:[#allocation2] sm:$0xff]
        %v821 = vld [vmem:[#allocation2 + $0x8] sm:$0xff]
        %v822 = vld [vmem:[#allocation2 + $0x10] sm:$0xff]
        %v823 = vld [vmem:[#allocation2 + $0x18] sm:$0xff]
        %v824 = vld [vmem:[#allocation2 + $0x20] sm:$0xff]
        %v825 = vld [vmem:[#allocation2 + $0x28] sm:$0xff]
        %v826 = vld [vmem:[#allocation2 + $0x30] sm:$0xff]
        %v827 = vld [vmem:[#allocation2 + $0x38] sm:$0xff]
        %v828 = vld [vmem:[#allocation2 + $0x40] sm:$0xff]
        %v829 = vadd.f32 %v820, %v783
        %v830 = vadd.f32 %v821, %v786
        %v831 = vadd.f32 %v822, %v791
        %v832 = vadd.f32 %v823, %v794
        %v833 = vadd.f32 %v824, %v799
        %v834 = vadd.f32 %v825, %v802
        %v835 = vadd.f32 %v826, %v807
        %v836 = vadd.f32 %v827, %v810
        %v837 = vadd.f32 %v828, %v815
        %838 = vst [vmem:[#allocation2] sm:$0xff] %v829
        %839 = vst [vmem:[#allocation2 + $0x8] sm:$0xff] %v830
        %840 = vst [vmem:[#allocation2 + $0x10] sm:$0xff] %v831
        %841 = vst [vmem:[#allocation2 + $0x18] sm:$0xff] %v832
        %842 = vst [vmem:[#allocation2 + $0x20] sm:$0xff] %v833
        %843 = vst [vmem:[#allocation2 + $0x28] sm:$0xff] %v834
        %844 = vst [vmem:[#allocation2 + $0x30] sm:$0xff] %v835
        %845 = vst [vmem:[#allocation2 + $0x38] sm:$0xff] %v836
        %846 = vst [vmem:[#allocation2 + $0x40] sm:$0xff] %v837
        %s847 = scalar_lea.vmem %s206, 132
        %v848 = vld [vmem:[%s847] sm:$0xf]
        %v849 = vld [vmem:[%s847 + $0x4] sm:$0xf]
        %v850 = vld [vmem:[%s847 + $0x8] sm:$0xf]
        %v851 = vld [vmem:[%s847 + $0xc] sm:$0xf]
        %v852 = vld [vmem:[%s847 + $0x10] sm:$0xf]
        %v853 = vld [vmem:[%s847 + $0x14] sm:$0xf]
        %v854 = vld [vmem:[%s847 + $0x18] sm:$0xf]
        %v855 = vld [vmem:[%s847 + $0x1c] sm:$0xf]
        %v856 = vld [vmem:[%s847 + $0x20] sm:$0xf]
        %s857 = scalar_lea.vmem %s210, 8
        %v858 = vld [vmem:[%s857] sm:$0x3]
        %v868 = vunpack.c.l.b16 %v848
        %v869 = vunpack.c.l.b16 %v849
        %v870 = vunpack.c.l.b16 %v850
        %v871 = vunpack.c.l.b16 %v851
        %v872 = vunpack.c.l.b16 %v852
        %v873 = vunpack.c.l.b16 %v853
        %v874 = vunpack.c.l.b16 %v854
        %v875 = vunpack.c.l.b16 %v855
        %v876 = vunpack.c.l.b16 %v856
        %v877 = vpack.c.b16 %v869, %v868
        %v878 = vpack.c.b16 %v871, %v870
        %v879 = vpack.c.b16 %v873, %v872
        %v880 = vpack.c.b16 %v875, %v874
        %v881 = vpack.c.b16 %v876, %v876
        %v883 = vsel %vm248, %v877, 0
        %v886 = vsel %vm248, %v878, 0
        %v889 = vsel %vm248, %v879, 0
        %v892 = vsel %vm248, %v880, 0
        %v895 = vsel %vm248, %v881, 0
        %v898 = vsel %vm264, %v858, 0
        %900 = vmatprep.subr.bf16.mxu0 0
        %901 = vmatpush1.bf16.msra.mxu0 %v898
        %902 = vmatprep.subr.bf16.mxu0 0
        %903 = vmatpush1.bf16.msra.mxu0 0
        %904 = vmatprep.subr.bf16.mxu0 0
        %905 = vmatpush1.bf16.msra.mxu0 0
        %906 = vmatprep.subr.bf16.mxu0 0
        %907 = vmatpush1.bf16.msra.mxu0 0
        %908 = vmatprep.subr.bf16.mxu0 0
        %909 = vmatpush1.bf16.msra.mxu0 0
        %910 = vmatprep.subr.bf16.mxu0 0
        %911 = vmatpush1.bf16.msra.mxu0 0
        %912 = vmatprep.subr.bf16.mxu0 0
        %913 = vmatpush1.bf16.msra.mxu0 0
        %914 = vmatprep.subr.bf16.mxu0 0
        %915 = vmatpush1.bf16.msra.mxu0 0
        %916 = vmatprep.subr.bf16.mxu0 0
        %917 = vmatpush1.bf16.msra.mxu0 0
        %918 = vmatprep.subr.bf16.mxu0 0
        %919 = vmatpush1.bf16.msra.mxu0 0
        %920 = vmatprep.subr.bf16.mxu0 0
        %921 = vmatpush1.bf16.msra.mxu0 0
        %922 = vmatprep.subr.bf16.mxu0 0
        %923 = vmatpush1.bf16.msra.mxu0 0
        %924 = vmatprep.subr.bf16.mxu0 0
        %925 = vmatpush1.bf16.msra.mxu0 0
        %926 = vmatprep.subr.bf16.mxu0 0
        %927 = vmatpush1.bf16.msra.mxu0 0
        %928 = vmatprep.subr.bf16.mxu0 0
        %929 = vmatpush1.bf16.msra.mxu0 0
        %930 = vmatprep.subr.bf16.mxu0 0
        %931 = vmatpush1.bf16.msra.mxu0 0
        %932 = vmatprep.mubr.bf16.mxu0 0
        %933 = vmatmul.mubr.bf16.gmra.mrb[0].mxu0 %v883
        %v934 = vpop.f32.mrb[0].mxu0
        %v935 = vadd.f32 0.0, %v934
        %v936 = vpop.f32.mrb[0].mxu0
        %v937 = vpop.f32.mrb[0].mxu0
        %v938 = vadd.f32 0.0, %v937
        %v939 = vpop.f32.mrb[0].mxu0
        %940 = vmatprep.mubr.bf16.mxu0 0
        %941 = vmatmul.mubr.bf16.gmra.mrb[0].mxu0 %v886
        %v942 = vpop.f32.mrb[0].mxu0
        %v943 = vadd.f32 0.0, %v942
        %v944 = vpop.f32.mrb[0].mxu0
        %v945 = vpop.f32.mrb[0].mxu0
        %v946 = vadd.f32 0.0, %v945
        %v947 = vpop.f32.mrb[0].mxu0
        %948 = vmatprep.mubr.bf16.mxu0 0
        %949 = vmatmul.mubr.bf16.gmra.mrb[0].mxu0 %v889
        %v950 = vpop.f32.mrb[0].mxu0
        %v951 = vadd.f32 0.0, %v950
        %v952 = vpop.f32.mrb[0].mxu0
        %v953 = vpop.f32.mrb[0].mxu0
        %v954 = vadd.f32 0.0, %v953
        %v955 = vpop.f32.mrb[0].mxu0
        %956 = vmatprep.mubr.bf16.mxu0 0
        %957 = vmatmul.mubr.bf16.gmra.mrb[0].mxu0 %v892
        %v958 = vpop.f32.mrb[0].mxu0
        %v959 = vadd.f32 0.0, %v958
        %v960 = vpop.f32.mrb[0].mxu0
        %v961 = vpop.f32.mrb[0].mxu0
        %v962 = vadd.f32 0.0, %v961
        %v963 = vpop.f32.mrb[0].mxu0
        %964 = vmatprep.mubr.bf16.mxu0 0
        %965 = vmatmul.mubr.bf16.gmra.mrb[0].mxu0 %v895
        %v966 = vpop.f32.mrb[0].mxu0
        %v967 = vadd.f32 0.0, %v966
        %v968 = vpop.f32.mrb[0].mxu0
        %v969 = vpop.f32.mrb[0].mxu0
        %v970 = vpop.f32.mrb[0].mxu0
        %971 = vdwg.mxu0
        %v972 = vld [vmem:[#allocation2] sm:$0xff]
        %v973 = vld [vmem:[#allocation2 + $0x8] sm:$0xff]
        %v974 = vld [vmem:[#allocation2 + $0x10] sm:$0xff]
        %v975 = vld [vmem:[#allocation2 + $0x18] sm:$0xff]
        %v976 = vld [vmem:[#allocation2 + $0x20] sm:$0xff]
        %v977 = vld [vmem:[#allocation2 + $0x28] sm:$0xff]
        %v978 = vld [vmem:[#allocation2 + $0x30] sm:$0xff]
        %v979 = vld [vmem:[#allocation2 + $0x38] sm:$0xff]
        %v980 = vld [vmem:[#allocation2 + $0x40] sm:$0xff]
        %v981 = vadd.f32 %v972, %v935
        %v982 = vadd.f32 %v973, %v938
        %v983 = vadd.f32 %v974, %v943
        %v984 = vadd.f32 %v975, %v946
        %v985 = vadd.f32 %v976, %v951
        %v986 = vadd.f32 %v977, %v954
        %v987 = vadd.f32 %v978, %v959
        %v988 = vadd.f32 %v979, %v962
        %v989 = vadd.f32 %v980, %v967
        %990 = vst [vmem:[#allocation2] sm:$0xff] %v981
        %991 = vst [vmem:[#allocation2 + $0x8] sm:$0xff] %v982
        %992 = vst [vmem:[#allocation2 + $0x10] sm:$0xff] %v983
        %993 = vst [vmem:[#allocation2 + $0x18] sm:$0xff] %v984
        %994 = vst [vmem:[#allocation2 + $0x20] sm:$0xff] %v985
        %995 = vst [vmem:[#allocation2 + $0x28] sm:$0xff] %v986
        %996 = vst [vmem:[#allocation2 + $0x30] sm:$0xff] %v987
        %997 = vst [vmem:[#allocation2 + $0x38] sm:$0xff] %v988
        %998 = vst [vmem:[#allocation2 + $0x40] sm:$0xff] %v989
        %v999 = vld [vmem:[%s695] sm:$0xf]
        %v1000 = vld [vmem:[%s695 + $0x4] sm:$0xf]
        %v1001 = vld [vmem:[%s695 + $0x8] sm:$0xf]
        %v1002 = vld [vmem:[%s695 + $0xc] sm:$0xf]
        %v1003 = vld [vmem:[%s695 + $0x10] sm:$0xf]
        %v1004 = vld [vmem:[%s695 + $0x14] sm:$0xf]
        %v1005 = vld [vmem:[%s695 + $0x18] sm:$0xf]
        %v1006 = vld [vmem:[%s695 + $0x1c] sm:$0xf]
        %v1007 = vld [vmem:[%s695 + $0x20] sm:$0xf]
        %v1008 = vld [vmem:[%s695 + $0x24] sm:$0x1]
        %s1009 = scalar_lea.vmem %s210, 10
        %v1010 = vld [vmem:[%s1009] sm:$0x3]
        %v1021 = vunpack.c.l.b16 %v999
        %v1022 = vunpack.c.l.b16 %v1000
        %v1023 = vunpack.c.l.b16 %v1001
        %v1024 = vunpack.c.l.b16 %v1002
        %v1025 = vunpack.c.l.b16 %v1003
        %v1026 = vunpack.c.l.b16 %v1004
        %v1027 = vunpack.c.l.b16 %v1005
        %v1028 = vunpack.c.l.b16 %v1006
        %v1029 = vunpack.c.l.b16 %v1007
        %v1030 = vunpack.c.l.b16 %v1008
        %v1031 = vpack.c.b16 %v1022, %v1021
        %v1032 = vpack.c.b16 %v1024, %v1023
        %v1033 = vpack.c.b16 %v1026, %v1025
        %v1034 = vpack.c.b16 %v1028, %v1027
        %v1035 = vpack.c.b16 %v1030, %v1029
        %v1037 = vshrl.u32 %v1031, 16
        %v1039 = vshll.u32 %v1031, 16
        %v1041 = vrot.slane %v1039, 1
        %v1042 = vor.u32 %v1037, %v1041
        %v1044 = vshll.u32 %v1032, 16
        %v1046 = vrot.slane %v1044, 1
        %v1047 = vsel %vm538, %v1042, %v1046
        %v1048 = vshrl.u32 %v1032, 16
        %v1050 = vor.u32 %v1048, %v1046
        %v1052 = vshll.u32 %v1033, 16
        %v1054 = vrot.slane %v1052, 1
        %v1055 = vsel %vm538, %v1050, %v1054
        %v1056 = vshrl.u32 %v1033, 16
        %v1058 = vor.u32 %v1056, %v1054
        %v1060 = vshll.u32 %v1034, 16
        %v1062 = vrot.slane %v1060, 1
        %v1063 = vsel %vm538, %v1058, %v1062
        %v1064 = vshrl.u32 %v1034, 16
        %v1066 = vor.u32 %v1064, %v1062
        %v1068 = vshll.u32 %v1035, 16
        %v1070 = vrot.slane %v1068, 1
        %v1071 = vsel %vm538, %v1066, %v1070
        %v1072 = vshrl.u32 %v1035, 16
        %v1074 = vor.u32 %v1072, %v1070
        %v1076 = vsel %vm248, %v1047, 0
        %v1079 = vsel %vm248, %v1055, 0
        %v1082 = vsel %vm248, %v1063, 0
        %v1085 = vsel %vm248, %v1071, 0
        %v1088 = vsel %vm248, %v1074, 0
        %v1091 = vsel %vm264, %v1010, 0
        %1093 = vmatprep.subr.bf16.mxu0 0
        %1094 = vmatpush1.bf16.msra.mxu0 %v1091
        %1095 = vmatprep.subr.bf16.mxu0 0
        %1096 = vmatpush1.bf16.msra.mxu0 0
        %1097 = vmatprep.subr.bf16.mxu0 0
        %1098 = vmatpush1.bf16.msra.mxu0 0
        %1099 = vmatprep.subr.bf16.mxu0 0
        %1100 = vmatpush1.bf16.msra.mxu0 0
        %1101 = vmatprep.subr.bf16.mxu0 0
        %1102 = vmatpush1.bf16.msra.mxu0 0
        %1103 = vmatprep.subr.bf16.mxu0 0
        %1104 = vmatpush1.bf16.msra.mxu0 0
        %1105 = vmatprep.subr.bf16.mxu0 0
        %1106 = vmatpush1.bf16.msra.mxu0 0
        %1107 = vmatprep.subr.bf16.mxu0 0
        %1108 = vmatpush1.bf16.msra.mxu0 0
        %1109 = vmatprep.subr.bf16.mxu0 0
        %1110 = vmatpush1.bf16.msra.mxu0 0
        %1111 = vmatprep.subr.bf16.mxu0 0
        %1112 = vmatpush1.bf16.msra.mxu0 0
        %1113 = vmatprep.subr.bf16.mxu0 0
        %1114 = vmatpush1.bf16.msra.mxu0 0
        %1115 = vmatprep.subr.bf16.mxu0 0
        %1116 = vmatpush1.bf16.msra.mxu0 0
        %1117 = vmatprep.subr.bf16.mxu0 0
        %1118 = vmatpush1.bf16.msra.mxu0 0
        %1119 = vmatprep.subr.bf16.mxu0 0
        %1120 = vmatpush1.bf16.msra.mxu0 0
        %1121 = vmatprep.subr.bf16.mxu0 0
        %1122 = vmatpush1.bf16.msra.mxu0 0
        %1123 = vmatprep.subr.bf16.mxu0 0
        %1124 = vmatpush1.bf16.msra.mxu0 0
        %1125 = vmatprep.mubr.bf16.mxu0 0
        %1126 = vmatmul.mubr.bf16.gmra.mrb[0].mxu0 %v1076
        %v1127 = vpop.f32.mrb[0].mxu0
        %v1128 = vadd.f32 0.0, %v1127
        %v1129 = vpop.f32.mrb[0].mxu0
        %v1130 = vpop.f32.mrb[0].mxu0
        %v1131 = vadd.f32 0.0, %v1130
        %v1132 = vpop.f32.mrb[0].mxu0
        %1133 = vmatprep.mubr.bf16.mxu0 0
        %1134 = vmatmul.mubr.bf16.gmra.mrb[0].mxu0 %v1079
        %v1135 = vpop.f32.mrb[0].mxu0
        %v1136 = vadd.f32 0.0, %v1135
        %v1137 = vpop.f32.mrb[0].mxu0
        %v1138 = vpop.f32.mrb[0].mxu0
        %v1139 = vadd.f32 0.0, %v1138
        %v1140 = vpop.f32.mrb[0].mxu0
        %1141 = vmatprep.mubr.bf16.mxu0 0
        %1142 = vmatmul.mubr.bf16.gmra.mrb[0].mxu0 %v1082
        %v1143 = vpop.f32.mrb[0].mxu0
        %v1144 = vadd.f32 0.0, %v1143
        %v1145 = vpop.f32.mrb[0].mxu0
        %v1146 = vpop.f32.mrb[0].mxu0
        %v1147 = vadd.f32 0.0, %v1146
        %v1148 = vpop.f32.mrb[0].mxu0
        %1149 = vmatprep.mubr.bf16.mxu0 0
        %1150 = vmatmul.mubr.bf16.gmra.mrb[0].mxu0 %v1085
        %v1151 = vpop.f32.mrb[0].mxu0
        %v1152 = vadd.f32 0.0, %v1151
        %v1153 = vpop.f32.mrb[0].mxu0
        %v1154 = vpop.f32.mrb[0].mxu0
        %v1155 = vadd.f32 0.0, %v1154
        %v1156 = vpop.f32.mrb[0].mxu0
        %1157 = vmatprep.mubr.bf16.mxu0 0
        %1158 = vmatmul.mubr.bf16.gmra.mrb[0].mxu0 %v1088
        %v1159 = vpop.f32.mrb[0].mxu0
        %v1160 = vadd.f32 0.0, %v1159
        %v1161 = vpop.f32.mrb[0].mxu0
        %v1162 = vpop.f32.mrb[0].mxu0
        %v1163 = vpop.f32.mrb[0].mxu0
        %1164 = vdwg.mxu0
        %v1165 = vld [vmem:[#allocation2] sm:$0xff]
        %v1166 = vld [vmem:[#allocation2 + $0x8] sm:$0xff]
        %v1167 = vld [vmem:[#allocation2 + $0x10] sm:$0xff]
        %v1168 = vld [vmem:[#allocation2 + $0x18] sm:$0xff]
        %v1169 = vld [vmem:[#allocation2 + $0x20] sm:$0xff]
        %v1170 = vld [vmem:[#allocation2 + $0x28] sm:$0xff]
        %v1171 = vld [vmem:[#allocation2 + $0x30] sm:$0xff]
        %v1172 = vld [vmem:[#allocation2 + $0x38] sm:$0xff]
        %v1173 = vld [vmem:[#allocation2 + $0x40] sm:$0xff]
        %v1174 = vadd.f32 %v1165, %v1128
        %v1175 = vadd.f32 %v1166, %v1131
        %v1176 = vadd.f32 %v1167, %v1136
        %v1177 = vadd.f32 %v1168, %v1139
        %v1178 = vadd.f32 %v1169, %v1144
        %v1179 = vadd.f32 %v1170, %v1147
        %v1180 = vadd.f32 %v1171, %v1152
        %v1181 = vadd.f32 %v1172, %v1155
        %v1182 = vadd.f32 %v1173, %v1160
        %1183 = vst [vmem:[#allocation2] sm:$0xff] %v1174
        %1184 = vst [vmem:[#allocation2 + $0x8] sm:$0xff] %v1175
        %1185 = vst [vmem:[#allocation2 + $0x10] sm:$0xff] %v1176
        %1186 = vst [vmem:[#allocation2 + $0x18] sm:$0xff] %v1177
        %1187 = vst [vmem:[#allocation2 + $0x20] sm:$0xff] %v1178
        %1188 = vst [vmem:[#allocation2 + $0x28] sm:$0xff] %v1179
        %1189 = vst [vmem:[#allocation2 + $0x30] sm:$0xff] %v1180
        %1190 = vst [vmem:[#allocation2 + $0x38] sm:$0xff] %v1181
        %1191 = vst [vmem:[#allocation2 + $0x40] sm:$0xff] %v1182
        %v1192 = vld [vmem:[%s206 + $0x4] sm:$0xf]
        %v1193 = vld [vmem:[%s206 + $0x8] sm:$0xf]
        %v1194 = vld [vmem:[%s206 + $0xc] sm:$0xf]
        %v1195 = vld [vmem:[%s206 + $0x10] sm:$0xf]
        %v1196 = vld [vmem:[%s206 + $0x14] sm:$0xf]
        %v1197 = vld [vmem:[%s206 + $0x18] sm:$0xf]
        %v1198 = vld [vmem:[%s206 + $0x1c] sm:$0xf]
        %v1199 = vld [vmem:[%s206 + $0x20] sm:$0xf]
        %v1200 = vld [vmem:[%s206 + $0x24] sm:$0xf]
        %v1201 = vld [vmem:[%s206 + $0x28] sm:$0x1]
        %s1202 = scalar_lea.vmem %s210, 12
        %v1203 = vld [vmem:[%s1202] sm:$0x3]
        %v1214 = vunpack.c.l.b16 %v1192
        %v1215 = vunpack.c.l.b16 %v1193
        %v1216 = vunpack.c.l.b16 %v1194
        %v1217 = vunpack.c.l.b16 %v1195
        %v1218 = vunpack.c.l.b16 %v1196
        %v1219 = vunpack.c.l.b16 %v1197
        %v1220 = vunpack.c.l.b16 %v1198
        %v1221 = vunpack.c.l.b16 %v1199
        %v1222 = vunpack.c.l.b16 %v1200
        %v1223 = vunpack.c.l.b16 %v1201
        %v1224 = vpack.c.b16 %v1215, %v1214
        %v1225 = vpack.c.b16 %v1217, %v1216
        %v1226 = vpack.c.b16 %v1219, %v1218
        %v1227 = vpack.c.b16 %v1221, %v1220
        %v1228 = vpack.c.b16 %v1223, %v1222
        %v1230 = vshrl.u32 %v1224, 16
        %v1232 = vshll.u32 %v1224, 16
        %v1234 = vrot.slane %v1232, 1
        %v1235 = vor.u32 %v1230, %v1234
        %v1237 = vshll.u32 %v1225, 16
        %v1239 = vrot.slane %v1237, 1
        %v1240 = vsel %vm538, %v1235, %v1239
        %v1241 = vshrl.u32 %v1225, 16
        %v1243 = vor.u32 %v1241, %v1239
        %v1245 = vshll.u32 %v1226, 16
        %v1247 = vrot.slane %v1245, 1
        %v1248 = vsel %vm538, %v1243, %v1247
        %v1249 = vshrl.u32 %v1226, 16
        %v1251 = vor.u32 %v1249, %v1247
        %v1253 = vshll.u32 %v1227, 16
        %v1255 = vrot.slane %v1253, 1
        %v1256 = vsel %vm538, %v1251, %v1255
        %v1257 = vshrl.u32 %v1227, 16
        %v1259 = vor.u32 %v1257, %v1255
        %v1261 = vshll.u32 %v1228, 16
        %v1263 = vrot.slane %v1261, 1
        %v1264 = vsel %vm538, %v1259, %v1263
        %v1265 = vshrl.u32 %v1228, 16
        %v1267 = vor.u32 %v1265, %v1263
        %v1269 = vsel %vm248, %v1240, 0
        %v1272 = vsel %vm248, %v1248, 0
        %v1275 = vsel %vm248, %v1256, 0
        %v1278 = vsel %vm248, %v1264, 0
        %v1281 = vsel %vm248, %v1267, 0
        %v1284 = vsel %vm264, %v1203, 0
        %1286 = vmatprep.subr.bf16.mxu0 0
        %1287 = vmatpush1.bf16.msra.mxu0 %v1284
        %1288 = vmatprep.subr.bf16.mxu0 0
        %1289 = vmatpush1.bf16.msra.mxu0 0
        %1290 = vmatprep.subr.bf16.mxu0 0
        %1291 = vmatpush1.bf16.msra.mxu0 0
        %1292 = vmatprep.subr.bf16.mxu0 0
        %1293 = vmatpush1.bf16.msra.mxu0 0
        %1294 = vmatprep.subr.bf16.mxu0 0
        %1295 = vmatpush1.bf16.msra.mxu0 0
        %1296 = vmatprep.subr.bf16.mxu0 0
        %1297 = vmatpush1.bf16.msra.mxu0 0
        %1298 = vmatprep.subr.bf16.mxu0 0
        %1299 = vmatpush1.bf16.msra.mxu0 0
        %1300 = vmatprep.subr.bf16.mxu0 0
        %1301 = vmatpush1.bf16.msra.mxu0 0
        %1302 = vmatprep.subr.bf16.mxu0 0
        %1303 = vmatpush1.bf16.msra.mxu0 0
        %1304 = vmatprep.subr.bf16.mxu0 0
        %1305 = vmatpush1.bf16.msra.mxu0 0
        %1306 = vmatprep.subr.bf16.mxu0 0
        %1307 = vmatpush1.bf16.msra.mxu0 0
        %1308 = vmatprep.subr.bf16.mxu0 0
        %1309 = vmatpush1.bf16.msra.mxu0 0
        %1310 = vmatprep.subr.bf16.mxu0 0
        %1311 = vmatpush1.bf16.msra.mxu0 0
        %1312 = vmatprep.subr.bf16.mxu0 0
        %1313 = vmatpush1.bf16.msra.mxu0 0
        %1314 = vmatprep.subr.bf16.mxu0 0
        %1315 = vmatpush1.bf16.msra.mxu0 0
        %1316 = vmatprep.subr.bf16.mxu0 0
        %1317 = vmatpush1.bf16.msra.mxu0 0
        %1318 = vmatprep.mubr.bf16.mxu0 0
        %1319 = vmatmul.mubr.bf16.gmra.mrb[0].mxu0 %v1269
        %v1320 = vpop.f32.mrb[0].mxu0
        %v1321 = vadd.f32 0.0, %v1320
        %v1322 = vpop.f32.mrb[0].mxu0
        %v1323 = vpop.f32.mrb[0].mxu0
        %v1324 = vadd.f32 0.0, %v1323
        %v1325 = vpop.f32.mrb[0].mxu0
        %1326 = vmatprep.mubr.bf16.mxu0 0
        %1327 = vmatmul.mubr.bf16.gmra.mrb[0].mxu0 %v1272
        %v1328 = vpop.f32.mrb[0].mxu0
        %v1329 = vadd.f32 0.0, %v1328
        %v1330 = vpop.f32.mrb[0].mxu0
        %v1331 = vpop.f32.mrb[0].mxu0
        %v1332 = vadd.f32 0.0, %v1331
        %v1333 = vpop.f32.mrb[0].mxu0
        %1334 = vmatprep.mubr.bf16.mxu0 0
        %1335 = vmatmul.mubr.bf16.gmra.mrb[0].mxu0 %v1275
        %v1336 = vpop.f32.mrb[0].mxu0
        %v1337 = vadd.f32 0.0, %v1336
        %v1338 = vpop.f32.mrb[0].mxu0
        %v1339 = vpop.f32.mrb[0].mxu0
        %v1340 = vadd.f32 0.0, %v1339
        %v1341 = vpop.f32.mrb[0].mxu0
        %1342 = vmatprep.mubr.bf16.mxu0 0
        %1343 = vmatmul.mubr.bf16.gmra.mrb[0].mxu0 %v1278
        %v1344 = vpop.f32.mrb[0].mxu0
        %v1345 = vadd.f32 0.0, %v1344
        %v1346 = vpop.f32.mrb[0].mxu0
        %v1347 = vpop.f32.mrb[0].mxu0
        %v1348 = vadd.f32 0.0, %v1347
        %v1349 = vpop.f32.mrb[0].mxu0
        %1350 = vmatprep.mubr.bf16.mxu0 0
        %1351 = vmatmul.mubr.bf16.gmra.mrb[0].mxu0 %v1281
        %v1352 = vpop.f32.mrb[0].mxu0
        %v1353 = vadd.f32 0.0, %v1352
        %v1354 = vpop.f32.mrb[0].mxu0
        %v1355 = vpop.f32.mrb[0].mxu0
        %v1356 = vpop.f32.mrb[0].mxu0
        %1357 = vdwg.mxu0
        %v1358 = vld [vmem:[#allocation2] sm:$0xff]
        %v1359 = vld [vmem:[#allocation2 + $0x8] sm:$0xff]
        %v1360 = vld [vmem:[#allocation2 + $0x10] sm:$0xff]
        %v1361 = vld [vmem:[#allocation2 + $0x18] sm:$0xff]
        %v1362 = vld [vmem:[#allocation2 + $0x20] sm:$0xff]
        %v1363 = vld [vmem:[#allocation2 + $0x28] sm:$0xff]
        %v1364 = vld [vmem:[#allocation2 + $0x30] sm:$0xff]
        %v1365 = vld [vmem:[#allocation2 + $0x38] sm:$0xff]
        %v1366 = vld [vmem:[#allocation2 + $0x40] sm:$0xff]
        %v1367 = vadd.f32 %v1358, %v1321
        %v1368 = vadd.f32 %v1359, %v1324
        %v1369 = vadd.f32 %v1360, %v1329
        %v1370 = vadd.f32 %v1361, %v1332
        %v1371 = vadd.f32 %v1362, %v1337
        %v1372 = vadd.f32 %v1363, %v1340
        %v1373 = vadd.f32 %v1364, %v1345
        %v1374 = vadd.f32 %v1365, %v1348
        %v1375 = vadd.f32 %v1366, %v1353
        %1376 = vst [vmem:[#allocation2] sm:$0xff] %v1367
        %1377 = vst [vmem:[#allocation2 + $0x8] sm:$0xff] %v1368
        %1378 = vst [vmem:[#allocation2 + $0x10] sm:$0xff] %v1369
        %1379 = vst [vmem:[#allocation2 + $0x18] sm:$0xff] %v1370
        %1380 = vst [vmem:[#allocation2 + $0x20] sm:$0xff] %v1371
        %1381 = vst [vmem:[#allocation2 + $0x28] sm:$0xff] %v1372
        %1382 = vst [vmem:[#allocation2 + $0x30] sm:$0xff] %v1373
        %1383 = vst [vmem:[#allocation2 + $0x38] sm:$0xff] %v1374
        %1384 = vst [vmem:[#allocation2 + $0x40] sm:$0xff] %v1375
        %v1385 = vld [vmem:[%s349 + $0x4] sm:$0xf]
        %v1386 = vld [vmem:[%s349 + $0x8] sm:$0xf]
        %v1387 = vld [vmem:[%s349 + $0xc] sm:$0xf]
        %v1388 = vld [vmem:[%s349 + $0x10] sm:$0xf]
        %v1389 = vld [vmem:[%s349 + $0x14] sm:$0xf]
        %v1390 = vld [vmem:[%s349 + $0x18] sm:$0xf]
        %v1391 = vld [vmem:[%s349 + $0x1c] sm:$0xf]
        %v1392 = vld [vmem:[%s349 + $0x20] sm:$0xf]
        %v1393 = vld [vmem:[%s349 + $0x24] sm:$0xf]
        %v1394 = vld [vmem:[%s349 + $0x28] sm:$0x1]
        %s1395 = scalar_lea.vmem %s210, 14
        %v1396 = vld [vmem:[%s1395] sm:$0x3]
        %v1407 = vunpack.c.l.b16 %v1385
        %v1408 = vunpack.c.l.b16 %v1386
        %v1409 = vunpack.c.l.b16 %v1387
        %v1410 = vunpack.c.l.b16 %v1388
        %v1411 = vunpack.c.l.b16 %v1389
        %v1412 = vunpack.c.l.b16 %v1390
        %v1413 = vunpack.c.l.b16 %v1391
        %v1414 = vunpack.c.l.b16 %v1392
        %v1415 = vunpack.c.l.b16 %v1393
        %v1416 = vunpack.c.l.b16 %v1394
        %v1417 = vpack.c.b16 %v1408, %v1407
        %v1418 = vpack.c.b16 %v1410, %v1409
        %v1419 = vpack.c.b16 %v1412, %v1411
        %v1420 = vpack.c.b16 %v1414, %v1413
        %v1421 = vpack.c.b16 %v1416, %v1415
        %v1423 = vshrl.u32 %v1417, 16
        %v1425 = vshll.u32 %v1417, 16
        %v1427 = vrot.slane %v1425, 1
        %v1428 = vor.u32 %v1423, %v1427
        %v1430 = vshll.u32 %v1418, 16
        %v1432 = vrot.slane %v1430, 1
        %v1433 = vsel %vm538, %v1428, %v1432
        %v1434 = vshrl.u32 %v1418, 16
        %v1436 = vor.u32 %v1434, %v1432
        %v1438 = vshll.u32 %v1419, 16
        %v1440 = vrot.slane %v1438, 1
        %v1441 = vsel %vm538, %v1436, %v1440
        %v1442 = vshrl.u32 %v1419, 16
        %v1444 = vor.u32 %v1442, %v1440
        %v1446 = vshll.u32 %v1420, 16
        %v1448 = vrot.slane %v1446, 1
        %v1449 = vsel %vm538, %v1444, %v1448
        %v1450 = vshrl.u32 %v1420, 16
        %v1452 = vor.u32 %v1450, %v1448
        %v1454 = vshll.u32 %v1421, 16
        %v1456 = vrot.slane %v1454, 1
        %v1457 = vsel %vm538, %v1452, %v1456
        %v1458 = vshrl.u32 %v1421, 16
        %v1460 = vor.u32 %v1458, %v1456
        %v1462 = vsel %vm248, %v1433, 0
        %v1465 = vsel %vm248, %v1441, 0
        %v1468 = vsel %vm248, %v1449, 0
        %v1471 = vsel %vm248, %v1457, 0
        %v1474 = vsel %vm248, %v1460, 0
        %v1477 = vsel %vm264, %v1396, 0
        %1479 = vmatprep.subr.bf16.mxu0 0
        %1480 = vmatpush1.bf16.msra.mxu0 %v1477
        %1481 = vmatprep.subr.bf16.mxu0 0
        %1482 = vmatpush1.bf16.msra.mxu0 0
        %1483 = vmatprep.subr.bf16.mxu0 0
        %1484 = vmatpush1.bf16.msra.mxu0 0
        %1485 = vmatprep.subr.bf16.mxu0 0
        %1486 = vmatpush1.bf16.msra.mxu0 0
        %1487 = vmatprep.subr.bf16.mxu0 0
        %1488 = vmatpush1.bf16.msra.mxu0 0
        %1489 = vmatprep.subr.bf16.mxu0 0
        %1490 = vmatpush1.bf16.msra.mxu0 0
        %1491 = vmatprep.subr.bf16.mxu0 0
        %1492 = vmatpush1.bf16.msra.mxu0 0
        %1493 = vmatprep.subr.bf16.mxu0 0
        %1494 = vmatpush1.bf16.msra.mxu0 0
        %1495 = vmatprep.subr.bf16.mxu0 0
        %1496 = vmatpush1.bf16.msra.mxu0 0
        %1497 = vmatprep.subr.bf16.mxu0 0
        %1498 = vmatpush1.bf16.msra.mxu0 0
        %1499 = vmatprep.subr.bf16.mxu0 0
        %1500 = vmatpush1.bf16.msra.mxu0 0
        %1501 = vmatprep.subr.bf16.mxu0 0
        %1502 = vmatpush1.bf16.msra.mxu0 0
        %1503 = vmatprep.subr.bf16.mxu0 0
        %1504 = vmatpush1.bf16.msra.mxu0 0
        %1505 = vmatprep.subr.bf16.mxu0 0
        %1506 = vmatpush1.bf16.msra.mxu0 0
        %1507 = vmatprep.subr.bf16.mxu0 0
        %1508 = vmatpush1.bf16.msra.mxu0 0
        %1509 = vmatprep.subr.bf16.mxu0 0
        %1510 = vmatpush1.bf16.msra.mxu0 0
        %1511 = vmatprep.mubr.bf16.mxu0 0
        %1512 = vmatmul.mubr.bf16.gmra.mrb[0].mxu0 %v1462
        %v1513 = vpop.f32.mrb[0].mxu0
        %v1514 = vadd.f32 0.0, %v1513
        %v1515 = vpop.f32.mrb[0].mxu0
        %v1516 = vpop.f32.mrb[0].mxu0
        %v1517 = vadd.f32 0.0, %v1516
        %v1518 = vpop.f32.mrb[0].mxu0
        %1519 = vmatprep.mubr.bf16.mxu0 0
        %1520 = vmatmul.mubr.bf16.gmra.mrb[0].mxu0 %v1465
        %v1521 = vpop.f32.mrb[0].mxu0
        %v1522 = vadd.f32 0.0, %v1521
        %v1523 = vpop.f32.mrb[0].mxu0
        %v1524 = vpop.f32.mrb[0].mxu0
        %v1525 = vadd.f32 0.0, %v1524
        %v1526 = vpop.f32.mrb[0].mxu0
        %1527 = vmatprep.mubr.bf16.mxu0 0
        %1528 = vmatmul.mubr.bf16.gmra.mrb[0].mxu0 %v1468
        %v1529 = vpop.f32.mrb[0].mxu0
        %v1530 = vadd.f32 0.0, %v1529
        %v1531 = vpop.f32.mrb[0].mxu0
        %v1532 = vpop.f32.mrb[0].mxu0
        %v1533 = vadd.f32 0.0, %v1532
        %v1534 = vpop.f32.mrb[0].mxu0
        %1535 = vmatprep.mubr.bf16.mxu0 0
        %1536 = vmatmul.mubr.bf16.gmra.mrb[0].mxu0 %v1471
        %v1537 = vpop.f32.mrb[0].mxu0
        %v1538 = vadd.f32 0.0, %v1537
        %v1539 = vpop.f32.mrb[0].mxu0
        %v1540 = vpop.f32.mrb[0].mxu0
        %v1541 = vadd.f32 0.0, %v1540
        %v1542 = vpop.f32.mrb[0].mxu0
        %1543 = vmatprep.mubr.bf16.mxu0 0
        %1544 = vmatmul.mubr.bf16.gmra.mrb[0].mxu0 %v1474
        %v1545 = vpop.f32.mrb[0].mxu0
        %v1546 = vadd.f32 0.0, %v1545
        %v1547 = vpop.f32.mrb[0].mxu0
        %v1548 = vpop.f32.mrb[0].mxu0
        %v1549 = vpop.f32.mrb[0].mxu0
        %1550 = vdwg.mxu0
        %v1551 = vld [vmem:[#allocation2] sm:$0xff]
        %v1552 = vld [vmem:[#allocation2 + $0x8] sm:$0xff]
        %v1553 = vld [vmem:[#allocation2 + $0x10] sm:$0xff]
        %v1554 = vld [vmem:[#allocation2 + $0x18] sm:$0xff]
        %v1555 = vld [vmem:[#allocation2 + $0x20] sm:$0xff]
        %v1556 = vld [vmem:[#allocation2 + $0x28] sm:$0xff]
        %v1557 = vld [vmem:[#allocation2 + $0x30] sm:$0xff]
        %v1558 = vld [vmem:[#allocation2 + $0x38] sm:$0xff]
        %v1559 = vld [vmem:[#allocation2 + $0x40] sm:$0xff]
        %v1560 = vadd.f32 %v1551, %v1514
        %v1561 = vadd.f32 %v1552, %v1517
        %v1562 = vadd.f32 %v1553, %v1522
        %v1563 = vadd.f32 %v1554, %v1525
        %v1564 = vadd.f32 %v1555, %v1530
        %v1565 = vadd.f32 %v1556, %v1533
        %v1566 = vadd.f32 %v1557, %v1538
        %v1567 = vadd.f32 %v1558, %v1541
        %v1568 = vadd.f32 %v1559, %v1546
        %1569 = vst [vmem:[#allocation2] sm:$0xff] %v1560
        %1570 = vst [vmem:[#allocation2 + $0x8] sm:$0xff] %v1561
        %1571 = vst [vmem:[#allocation2 + $0x10] sm:$0xff] %v1562
        %1572 = vst [vmem:[#allocation2 + $0x18] sm:$0xff] %v1563
        %1573 = vst [vmem:[#allocation2 + $0x20] sm:$0xff] %v1564
        %1574 = vst [vmem:[#allocation2 + $0x28] sm:$0xff] %v1565
        %1575 = vst [vmem:[#allocation2 + $0x30] sm:$0xff] %v1566
        %1576 = vst [vmem:[#allocation2 + $0x38] sm:$0xff] %v1567
        %1577 = vst [vmem:[#allocation2 + $0x40] sm:$0xff] %v1568
        %v1578 = vld [vmem:[%s206 + $0x4] sm:$0xe]
        %v1579 = vld [vmem:[%s206 + $0x8] sm:$0xf]
        %v1580 = vld [vmem:[%s206 + $0xc] sm:$0xf]
        %v1581 = vld [vmem:[%s206 + $0x10] sm:$0xf]
        %v1582 = vld [vmem:[%s206 + $0x14] sm:$0xf]
        %v1583 = vld [vmem:[%s206 + $0x18] sm:$0xf]
        %v1584 = vld [vmem:[%s206 + $0x1c] sm:$0xf]
        %v1585 = vld [vmem:[%s206 + $0x20] sm:$0xf]
        %v1586 = vld [vmem:[%s206 + $0x24] sm:$0xf]
        %v1587 = vld [vmem:[%s206 + $0x28] sm:$0x1]
        %s1588 = scalar_lea.vmem %s210, 16
        %v1589 = vld [vmem:[%s1588] sm:$0x3]
        %v1600 = vunpack.c.l.b16 %v1578
        %v1601 = vunpack.c.l.b16 %v1579
        %v1602 = vunpack.c.l.b16 %v1580
        %v1603 = vunpack.c.l.b16 %v1581
        %v1604 = vunpack.c.l.b16 %v1582
        %v1605 = vunpack.c.l.b16 %v1583
        %v1606 = vunpack.c.l.b16 %v1584
        %v1607 = vunpack.c.l.b16 %v1585
        %v1608 = vunpack.c.l.b16 %v1586
        %v1609 = vunpack.c.l.b16 %v1587
        %v1610 = vpack.c.b16 %v1601, %v1600
        %v1611 = vpack.c.b16 %v1603, %v1602
        %v1612 = vpack.c.b16 %v1605, %v1604
        %v1613 = vpack.c.b16 %v1607, %v1606
        %v1614 = vpack.c.b16 %v1609, %v1608
        %vm1615 = vcmask 1046528
        %v1616 = vrot.slane %v1610, 1
        %v1617 = vrot.slane %v1611, 1
        %v1618 = vsel %vm1615, %v1616, %v1617
        %v1619 = vrot.slane %v1612, 1
        %v1620 = vsel %vm1615, %v1617, %v1619
        %v1621 = vrot.slane %v1613, 1
        %v1622 = vsel %vm1615, %v1619, %v1621
        %v1623 = vrot.slane %v1614, 1
        %v1624 = vsel %vm1615, %v1621, %v1623
        %v1626 = vsel %vm248, %v1618, 0
        %v1629 = vsel %vm248, %v1620, 0
        %v1632 = vsel %vm248, %v1622, 0
        %v1635 = vsel %vm248, %v1624, 0
        %v1638 = vsel %vm248, %v1623, 0
        %v1641 = vsel %vm264, %v1589, 0
        %1643 = vmatprep.subr.bf16.mxu0 0
        %1644 = vmatpush1.bf16.msra.mxu0 %v1641
        %1645 = vmatprep.subr.bf16.mxu0 0
        %1646 = vmatpush1.bf16.msra.mxu0 0
        %1647 = vmatprep.subr.bf16.mxu0 0
        %1648 = vmatpush1.bf16.msra.mxu0 0
        %1649 = vmatprep.subr.bf16.mxu0 0
        %1650 = vmatpush1.bf16.msra.mxu0 0
        %1651 = vmatprep.subr.bf16.mxu0 0
        %1652 = vmatpush1.bf16.msra.mxu0 0
        %1653 = vmatprep.subr.bf16.mxu0 0
        %1654 = vmatpush1.bf16.msra.mxu0 0
        %1655 = vmatprep.subr.bf16.mxu0 0
        %1656 = vmatpush1.bf16.msra.mxu0 0
        %1657 = vmatprep.subr.bf16.mxu0 0
        %1658 = vmatpush1.bf16.msra.mxu0 0
        %1659 = vmatprep.subr.bf16.mxu0 0
        %1660 = vmatpush1.bf16.msra.mxu0 0
        %1661 = vmatprep.subr.bf16.mxu0 0
        %1662 = vmatpush1.bf16.msra.mxu0 0
        %1663 = vmatprep.subr.bf16.mxu0 0
        %1664 = vmatpush1.bf16.msra.mxu0 0
        %1665 = vmatprep.subr.bf16.mxu0 0
        %1666 = vmatpush1.bf16.msra.mxu0 0
        %1667 = vmatprep.subr.bf16.mxu0 0
        %1668 = vmatpush1.bf16.msra.mxu0 0
        %1669 = vmatprep.subr.bf16.mxu0 0
        %1670 = vmatpush1.bf16.msra.mxu0 0
        %1671 = vmatprep.subr.bf16.mxu0 0
        %1672 = vmatpush1.bf16.msra.mxu0 0
        %1673 = vmatprep.subr.bf16.mxu0 0
        %1674 = vmatpush1.bf16.msra.mxu0 0
        %1675 = vmatprep.mubr.bf16.mxu0 0
        %1676 = vmatmul.mubr.bf16.gmra.mrb[0].mxu0 %v1626
        %v1677 = vpop.f32.mrb[0].mxu0
        %v1678 = vadd.f32 0.0, %v1677
        %v1679 = vpop.f32.mrb[0].mxu0
        %v1680 = vpop.f32.mrb[0].mxu0
        %v1681 = vadd.f32 0.0, %v1680
        %v1682 = vpop.f32.mrb[0].mxu0
        %1683 = vmatprep.mubr.bf16.mxu0 0
        %1684 = vmatmul.mubr.bf16.gmra.mrb[0].mxu0 %v1629
        %v1685 = vpop.f32.mrb[0].mxu0
        %v1686 = vadd.f32 0.0, %v1685
        %v1687 = vpop.f32.mrb[0].mxu0
        %v1688 = vpop.f32.mrb[0].mxu0
        %v1689 = vadd.f32 0.0, %v1688
        %v1690 = vpop.f32.mrb[0].mxu0
        %1691 = vmatprep.mubr.bf16.mxu0 0
        %1692 = vmatmul.mubr.bf16.gmra.mrb[0].mxu0 %v1632
        %v1693 = vpop.f32.mrb[0].mxu0
        %v1694 = vadd.f32 0.0, %v1693
        %v1695 = vpop.f32.mrb[0].mxu0
        %v1696 = vpop.f32.mrb[0].mxu0
        %v1697 = vadd.f32 0.0, %v1696
        %v1698 = vpop.f32.mrb[0].mxu0
        %1699 = vmatprep.mubr.bf16.mxu0 0
        %1700 = vmatmul.mubr.bf16.gmra.mrb[0].mxu0 %v1635
        %v1701 = vpop.f32.mrb[0].mxu0
        %v1702 = vadd.f32 0.0, %v1701
        %v1703 = vpop.f32.mrb[0].mxu0
        %v1704 = vpop.f32.mrb[0].mxu0
        %v1705 = vadd.f32 0.0, %v1704
        %v1706 = vpop.f32.mrb[0].mxu0
        %1707 = vmatprep.mubr.bf16.mxu0 0
        %1708 = vmatmul.mubr.bf16.gmra.mrb[0].mxu0 %v1638
        %v1709 = vpop.f32.mrb[0].mxu0
        %v1710 = vadd.f32 0.0, %v1709
        %v1711 = vpop.f32.mrb[0].mxu0
        %v1712 = vpop.f32.mrb[0].mxu0
        %v1713 = vpop.f32.mrb[0].mxu0
        %1714 = vdwg.mxu0
        %v1715 = vld [vmem:[#allocation2] sm:$0xff]
        %v1716 = vld [vmem:[#allocation2 + $0x8] sm:$0xff]
        %v1717 = vld [vmem:[#allocation2 + $0x10] sm:$0xff]
        %v1718 = vld [vmem:[#allocation2 + $0x18] sm:$0xff]
        %v1719 = vld [vmem:[#allocation2 + $0x20] sm:$0xff]
        %v1720 = vld [vmem:[#allocation2 + $0x28] sm:$0xff]
        %v1721 = vld [vmem:[#allocation2 + $0x30] sm:$0xff]
        %v1722 = vld [vmem:[#allocation2 + $0x38] sm:$0xff]
        %v1723 = vld [vmem:[#allocation2 + $0x40] sm:$0xff]
        %v1724 = vadd.f32 %v1715, %v1678
        %v1725 = vadd.f32 %v1716, %v1681
        %v1726 = vadd.f32 %v1717, %v1686
        %v1727 = vadd.f32 %v1718, %v1689
        %v1728 = vadd.f32 %v1719, %v1694
        %v1729 = vadd.f32 %v1720, %v1697
        %v1730 = vadd.f32 %v1721, %v1702
        %v1731 = vadd.f32 %v1722, %v1705
        %v1732 = vadd.f32 %v1723, %v1710
        %1733 = vst [vmem:[#allocation2] sm:$0xff] %v1724
        %1734 = vst [vmem:[#allocation2 + $0x8] sm:$0xff] %v1725
        %1735 = vst [vmem:[#allocation2 + $0x10] sm:$0xff] %v1726
        %1736 = vst [vmem:[#allocation2 + $0x18] sm:$0xff] %v1727
        %1737 = vst [vmem:[#allocation2 + $0x20] sm:$0xff] %v1728
        %1738 = vst [vmem:[#allocation2 + $0x28] sm:$0xff] %v1729
        %1739 = vst [vmem:[#allocation2 + $0x30] sm:$0xff] %v1730
        %1740 = vst [vmem:[#allocation2 + $0x38] sm:$0xff] %v1731
        %1741 = vst [vmem:[#allocation2 + $0x40] sm:$0xff] %v1732
        %v1742 = vld [vmem:[#allocation2] sm:$0xff]
        %v1743 = vld [vmem:[#allocation2 + $0x8] sm:$0xff]
        %v1744 = vld [vmem:[#allocation2 + $0x10] sm:$0xff]
        %v1745 = vld [vmem:[#allocation2 + $0x18] sm:$0xff]
        %v1746 = vld [vmem:[#allocation2 + $0x20] sm:$0xff]
        %v1747 = vld [vmem:[#allocation2 + $0x28] sm:$0xff]
        %v1748 = vld [vmem:[#allocation2 + $0x30] sm:$0xff]
        %v1749 = vld [vmem:[#allocation2 + $0x38] sm:$0xff]
        %v1750 = vld [vmem:[#allocation2 + $0x40] sm:$0xff]
        %v1751 = vld [vmem:[%s213] sm:$0x1]
        %v1753 = vlaneseq
        %v1754 = vshrl.u32 %v1753, 7
        %v1755 = vsub.s32 0, %v1754
        %v1756 = vrot.slane %v1751, %v1755
        %v1758 = vadd.f32 %v1742, %v1756
        %v1759 = vadd.f32 %v1743, %v1756
        %v1760 = vadd.f32 %v1744, %v1756
        %v1761 = vadd.f32 %v1745, %v1756
        %v1762 = vadd.f32 %v1746, %v1756
        %v1763 = vadd.f32 %v1747, %v1756
        %v1764 = vadd.f32 %v1748, %v1756
        %v1765 = vadd.f32 %v1749, %v1756
        %v1766 = vadd.f32 %v1750, %v1756
        %1767 = vst [vmem:[%s201] sm:$0xff] %v1758
        %1768 = vst [vmem:[%s201 + $0x8] sm:$0xff] %v1759
        %1769 = vst [vmem:[%s201 + $0x10] sm:$0xff] %v1760
        %1770 = vst [vmem:[%s201 + $0x18] sm:$0xff] %v1761
        %1771 = vst [vmem:[%s201 + $0x20] sm:$0xff] %v1762
        %1772 = vst [vmem:[%s201 + $0x28] sm:$0xff] %v1763
        %1773 = vst [vmem:[%s201 + $0x30] sm:$0xff] %v1764
        %1774 = vst [vmem:[%s201 + $0x38] sm:$0xff] %v1765
        %1775 = vst [vmem:[%s201 + $0x40] sm:$0xff] %v1766
        %s1776 = sand.u32 %s117, 1
        %s1777 = scalar_lea.sflag [#allocation4], %s1776
        %s1778 = sand.u32 %s117, 1
        %s1779 = smul.addr %s1778, 72
        %s1780 = scalar_lea.vmem [#allocation3], %s1779
        // Predicated region
        $region33: #{tpu_custom_call.1} parent=31 // pred_check
          %p1781 = pneg %p127
        $region34: #{tpu_custom_call.1} parent=31 // pred_check_branch
          %1783 = sbr.rel (%p1781) target = $region36
        $region35: #{tpu_custom_call.1} parent=31 // pred_region
          %s1785 = ssub.s32 1152, 1152
          %1786 = vsyncadd %s1777, %s1785
          %s1787 = smul.addr %s21, 9
          %s1788 = sadd.s32 %s22, %s1787
          %s1789 = smul.addr %s1788, 128
          %s1790 = scalar_lea.hbm %s3, %s1789
          %s1791 = sshll.u32 %s1780, 4
          %s1792 = int_to_ptr.vmem [resolvable:$true] %s1791
          %1797 = dma.vmem_to_hbm [thread:$0]  %s1792, 1152, %s1790, %s1777, 128, 128, 8
        $region36: #{tpu_custom_call.1} parent=31 // pred_fallthru
          _
      $region32: #{tpu_custom_call.1} parent=5 // pred_fallthru
        _
      %p1798 = scmp.le.s32.totalorder 2, %s12
      // Predicated region
      $region37: #{tpu_custom_call.1} parent=5 // pred_check
        %p1799 = pneg %p1798
      $region38: #{tpu_custom_call.1} parent=5 // pred_check_branch
        %1801 = sbr.rel (%p1799) target = $region40
      $region39: #{tpu_custom_call.1} parent=5 // pred_region
        %s1802 = ssub.s32 %s12, 2
        // Predicated region
        $region41: #{tpu_custom_call.1} parent=39 // pred_check
          %p1803 = pneg %p133
        $region42: #{tpu_custom_call.1} parent=39 // pred_check_branch
          %1805 = sbr.rel (%p1803) target = $region44
        $region43: #{tpu_custom_call.1} parent=39 // pred_region
          %s1806 = sand.u32 %s118, 1
          %s1807 = scalar_lea.sflag [#allocation4], %s1806
          %s1808 = sand.u32 %s118, 1
          %s1809 = smul.addr %s1808, 72
          %s1810 = scalar_lea.vmem [#allocation3], %s1809
          %1811 = dma.done %s1807, 1152
        $region44: #{tpu_custom_call.1} parent=39 // pred_fallthru
          _
      $region40: #{tpu_custom_call.1} parent=5 // pred_fallthru
        _
    $region6: #{tpu_custom_call.1} parent=1 // loop_footer
      %s16 = sadd.s32 1, %s12
    $region7: #{tpu_custom_call.1} parent=1 // loop_footer_branch
      %11 = sbr.rel target = $region3
    $region8: #{tpu_custom_call.1} parent=1 // loop_exit
      _
    %1812 = vsyncpa [#allocation4], 1
    %s1813 = scalar_lea.sflag [#allocation4], 1
    %1814 = vsyncpa %s1813, 1

</llo_original>
